<compile_context>
chip_gen: v5e
topology: v5e:2x2
jax: 0.10.0
libtpu: 0.0.40
codegen_flags: <defaults>
</compile_context>

<pallas_src>
import math

import numpy as np

import jax
import jax.numpy as jnp
from jax import lax
from jax.experimental import pallas as pl
from jax.experimental.pallas import tpu as pltpu


# ----------------------------------------------------------------------------
# Pallas kernel: per-channel (depthwise, groups = B*C) KxK convolution + bias.
# Layout: (BC, H*W) — channels on sublanes, flattened spatial on lanes.
# ----------------------------------------------------------------------------
def _make_dw_kernel(HW, W, K, ct, cg):
    KK = K * K
    pad = K // 2
    center = pad * K + pad
    nchunks = ct // cg
    # Static lane-roll amount per tap: rolled[p] = x[(p + d) % HW] with
    # d = (di - pad) * W + (dj - pad)   (np.roll semantics -> shift = -d).
    shifts = [(-((di - pad) * W + (dj - pad))) % HW
              for di in range(K) for dj in range(K)]

    def dw_kernel(x_ref, wb_ref, m_ref, o_ref):
        # x_ref : (ct, HW)     input slab, flattened H*W on the lane axis
        # wb_ref: (ct, KK+1)   per-channel taps (row-major di*K+dj) + bias column
        # m_ref : (KK, HW)     static zero-padding masks per tap (1.0 = in-bounds)
        # o_ref : (ct, HW)
        # Hoist the per-tap halo masks (channel-invariant) out of the chunk loop.
        masks = [m_ref[t:t + 1, :] for t in range(KK)]

        # Channel-chunk loop bounds live vreg pressure; each chunk is a pure
        # value computation ending in ONE store (no RMW on the output ref).
        for c in range(nchunks):
            c0 = c * cg
            xc = x_ref[c0:c0 + cg, :].astype(jnp.float32)        # (cg, HW)
            wb = wb_ref[c0:c0 + cg, :].astype(jnp.float32)       # (cg, KK+1)
            # Bias folded into the always-valid, unshifted center tap.
            acc = xc * wb[:, center:center + 1] + wb[:, KK:KK + 1]
            for t in range(KK):
                if t == center:
                    continue
                xr = pltpu.roll(xc, shifts[t], axis=1)           # XLU lane roll
                acc = acc + (xr * masks[t]) * wb[:, t:t + 1]     # VPU
            o_ref[c0:c0 + cg, :] = acc.astype(o_ref.dtype)

    return dw_kernel


def _vmem_capacity_bytes():
    try:
        cap = getattr(pltpu.get_tpu_info(), "vmem_capacity_bytes", None)
        if cap:
            return int(cap)
    except Exception:
        pass
    return 64 * 1024 * 1024  # conservative default (v7x-sized)


def _pick_channel_tile(BC, HW, itemsize):
    """Largest sublane tile (multiple of 8) dividing BC whose x block fits a
    generation-aware VMEM budget, preferring >= 4 grid steps so v7x's two
    TensorCores each get >= 2 pipelined iterations."""
    if BC % 8 != 0:
        return BC  # full-extent block (legal: equals the array dim)
    # Double-buffered x + out blocks plus side inputs ~= 4-5x the x block bytes.
    budget = max(256 * 1024, _vmem_capacity_bytes() // 12)
    divisors = [d for d in range(8, BC + 1, 8) if BC % d == 0]
    fitting = [d for d in divisors if d * HW * itemsize <= budget] or [8]
    preferred = [d for d in fitting if BC // d >= 4]
    return max(preferred) if preferred else max(fitting)


def _pick_channel_chunk(ct, HW):
    """Channels per inner step: keeps each live (cg, HW) f32 value to ~4 vregs."""
    if ct % 8 != 0:
        return ct
    cg = max(8, (4096 // max(HW, 1)) // 8 * 8)
    cg = min(cg, ct)
    while ct % cg:
        cg -= 8
    return cg


def _halo_masks(H, W, K):
    """(K*K, H*W) f32: 1.0 where the tap's source pixel is in-bounds (zero pad)."""
    pad = K // 2
    h = np.arange(H)[:, None]
    w = np.arange(W)[None, :]
    rows = []
    for di in range(K):
        for dj in range(K):
            oh, ow = di - pad, dj - pad
            valid = ((h + oh >= 0) & (h + oh < H)
                     & (w + ow >= 0) & (w + ow < W))
            rows.append(valid.reshape(-1).astype(np.float32))
    return jnp.asarray(np.stack(rows, axis=0))


def depthwise_dynamic_conv(x_flat, wb_flat, masks, H, W, K):
    """x_flat: (BC, H*W); wb_flat: (BC, K*K+1) taps+bias; masks: (K*K, H*W)."""
    BC, HW = x_flat.shape
    KK = K * K
    ct = _pick_channel_tile(BC, HW, x_flat.dtype.itemsize)
    cg = _pick_channel_chunk(ct, HW)
    grid = (pl.cdiv(BC, ct),)
    vmem_limit = int(min(_vmem_capacity_bytes() * 3 // 4, 100 * 1024 * 1024))

    # TODO(synk): for very large H*W (or BC not a multiple of 8) a second,
    # H-stripe grid axis with a 1-row halo would bound the block size; not
    # needed at these shapes.
    kernel = _make_dw_kernel(HW, W, K, ct, cg)
    return pl.pallas_call(
        kernel,
        out_shape=jax.ShapeDtypeStruct((BC, HW), x_flat.dtype),
        grid=grid,
        in_specs=[
            pl.BlockSpec((ct, HW), lambda i: (i, 0)),
            pl.BlockSpec((ct, KK + 1), lambda i: (i, 0)),
            pl.BlockSpec((KK, HW), lambda i: (0, 0)),
        ],
        out_specs=pl.BlockSpec((ct, HW), lambda i: (i, 0)),
        compiler_params=pltpu.CompilerParams(
            dimension_semantics=("parallel",),
            vmem_limit_bytes=vmem_limit,
        ),
    )(x_flat, wb_flat, masks)


# ----------------------------------------------------------------------------
# Plain-JAX glue (tiny ops on KxK = 3x3 spatial / per-channel scalars).
# ----------------------------------------------------------------------------
def _pool_matrix(n, K):
    """(K, n) averaging matrix matching torch.nn.AdaptiveAvgPool2d bin edges."""
    m = np.zeros((K, n), np.float32)
    for i in range(K):
        s = (i * n) // K
        e = -(-((i + 1) * n) // K)  # ceil
        m[i, s:e] = 1.0 / (e - s)
    return jnp.asarray(m)


def adaptive_avg_pool2d(x, K):
    """AdaptiveAvgPool2d((K, K)) for NCHW input as a single matmul pass."""
    _, _, H, W = x.shape
    Ph = _pool_matrix(H, K)  # (K, H)
    Pw = _pool_matrix(W, K)  # (K, W)
    return jnp.einsum("bchw,ih,jw->bcij", x, Ph, Pw)  # (B, C, K, K)


def proj_1x1(feat, params):
    """1x1 conv -> exact GELU -> 1x1 conv (ConvModule + Conv2d in the Sequential)."""
    h = jnp.einsum("bchw,oc->bohw", feat, params["proj_w1"])
    h = h + params["proj_b1"][None, :, None, None]
    h = jax.nn.gelu(h, approximate=False)
    h = jnp.einsum("bchw,oc->bohw", h, params["proj_w2"])
    h = h + params["proj_b2"][None, :, None, None]
    return h


def kpa_forward(params, x, moire, *, K=3, num_groups=2):
    B, C, H, W = x.shape
    G = num_groups
    BC = B * C

    xx = adaptive_avg_pool2d(x, K)                      # (B, C, K, K)
    mm = adaptive_avg_pool2d(moire, K)                  # (B, C, K, K)
    feat_cat = jnp.concatenate([mm, xx], axis=1)        # (B, 2C, K, K)

    # dynamic per-(b, c) KxK kernels
    scale = proj_1x1(feat_cat, params).reshape(B, G, C, K, K)
    scale = jax.nn.softmax(scale, axis=1)
    weight = jnp.sum(scale * params["weight"][None], axis=1)        # (B, C, K, K)

    # dynamic per-(b, c) bias
    feat_mean = jnp.mean(feat_cat, axis=(2, 3), keepdims=True)      # (B, 2C, 1, 1)
    scale_b = proj_1x1(feat_mean, params).reshape(B, G, C)
    scale_b = jax.nn.softmax(scale_b, axis=1)
    bias = jnp.sum(scale_b * params["bias"][None], axis=1)          # (B, C)

    # taps + bias packed side by side: (BC, K*K + 1); no layout transposes anywhere.
    wb = jnp.concatenate(
        [weight.reshape(BC, K * K), bias.reshape(BC, 1)], axis=1)

    masks = _halo_masks(H, W, K)                                    # (K*K, H*W)
    out_flat = depthwise_dynamic_conv(x.reshape(BC, H * W), wb, masks, H, W, K)
    return out_flat.reshape(B, C, H, W)


def init_params(key, dim, K=3, reduction_ratio=4, num_groups=2):
    hid = dim // reduction_ratio
    k0, k1, k2, k3, k4, k5, _ = jax.random.split(key, 7)
    params = {
        # KPA weight bank (torch.empty in the module -> deterministic init here)
        "weight": 0.02 * jax.random.normal(k0, (num_groups, dim, K, K), jnp.float32),
        # trunc_normal_(std=0.02)
        "bias": 0.02 * jax.random.truncated_normal(k1, -2.0, 2.0,
                                                   (num_groups, dim), jnp.float32),
        # proj[0] = ConvModule: Conv2d(2*dim -> dim//r, 1x1, bias) + GELU
        "proj_w1": jax.random.normal(k2, (hid, 2 * dim), jnp.float32)
        / math.sqrt(2 * dim),
        "proj_b1": 0.01 * jax.random.normal(k3, (hid,), jnp.float32),
        # proj[1] = Conv2d(dim//r -> dim*num_groups, 1x1, bias)
        "proj_w2": jax.random.normal(k4, (num_groups * dim, hid), jnp.float32)
        / math.sqrt(hid),
        "proj_b2": 0.01 * jax.random.normal(k5, (num_groups * dim,), jnp.float32),
    }
    # TODO(synk): self.conv_cat is defined in __init__ but never used in forward();
    # it is intentionally omitted here.
    return params


def _reference_depthwise(x, weight, bias, K):
    """Pure-JAX reference for the depthwise conv (correctness check)."""
    B, C, H, W = x.shape
    BC = B * C
    out = lax.conv_general_dilated(
        x.reshape(1, BC, H, W),
        weight.reshape(BC, 1, K, K),
        window_strides=(1, 1),
        padding=[(K // 2, K // 2), (K // 2, K // 2)],
        feature_group_count=BC,
        dimension_numbers=("NCHW", "OIHW", "NCHW"),
    )
    return (out + bias.reshape(1, BC, 1, 1)).reshape(B, C, H, W)


if __name__ == "__main__":
    B, C, H, W = 2, 128, 16, 16          # BC = 256 -> 4 parallel grid steps
    K, G, R = 3, 2, 4

    key = jax.random.PRNGKey(0)
    kx, km, kp = jax.random.split(key, 3)
    x = jax.random.normal(kx, (B, C, H, W), jnp.float32)
    moire = jax.random.normal(km, (B, C, H, W), jnp.float32)
    params = init_params(kp, C, K=K, reduction_ratio=R, num_groups=G)

    fwd = jax.jit(lambda p, a, b: kpa_forward(p, a, b, K=K, num_groups=G))
    out = jax.block_until_ready(fwd(params, x, moire))
    assert out.shape == (B, C, H, W)

    # cross-check the Pallas depthwise conv against lax.conv_general_dilated
    xx = adaptive_avg_pool2d(x, K)
    mm = adaptive_avg_pool2d(moire, K)
    feat_cat = jnp.concatenate([mm, xx], axis=1)
    scale = jax.nn.softmax(proj_1x1(feat_cat, params).reshape(B, G, C, K, K), axis=1)
    weight = jnp.sum(scale * params["weight"][None], axis=1)
    scale_b = jax.nn.softmax(
        proj_1x1(jnp.mean(feat_cat, axis=(2, 3), keepdims=True), params)
        .reshape(B, G, C), axis=1)
    bias = jnp.sum(scale_b * params["bias"][None], axis=1).reshape(B * C)
    ref = _reference_depthwise(x, weight, bias, K)
    assert jnp.allclose(out, ref, rtol=1e-4, atol=1e-4), "mismatch vs reference"

    print("KERNEL_OK")
</pallas_src>

<mosaic_0001>
module attributes {stable_mosaic.version = 11 : i64} {
  func.func @dw_kernel(%arg0: i32, %arg1: memref<64x256xf32, #tpu.memory_space<vmem>>, %arg2: memref<64x10xf32, #tpu.memory_space<vmem>>, %arg3: memref<9x256xf32, #tpu.memory_space<vmem>>, %arg4: memref<64x256xf32, #tpu.memory_space<vmem>>) attributes {dimension_semantics = [#tpu.dimension_semantics<parallel>], iteration_bounds = array<i64: 4>, scalar_prefetch = 0 : i64, scratch_operands = 0 : i64, tpu.core_type = #tpu.core_type<tc>, window_params = [{transform_indices = @transform_0, window_bounds = array<i64: 64, 256>}, {transform_indices = @transform_1, window_bounds = array<i64: 64, 10>}, {pipeline_mode = #tpu.pipeline_mode<synchronous>, transform_indices = @transform_2, window_bounds = array<i64: 9, 256>}, {transform_indices = @transform_3, window_bounds = array<i64: 64, 256>}]} {
    %c0 = arith.constant 0 : index
    %c0_0 = arith.constant 0 : index
    %0 = vector.load %arg3[%c0, %c0_0] : memref<9x256xf32, #tpu.memory_space<vmem>>, vector<1x256xf32>
    %c1 = arith.constant 1 : index
    %c0_1 = arith.constant 0 : index
    %1 = vector.load %arg3[%c1, %c0_1] : memref<9x256xf32, #tpu.memory_space<vmem>>, vector<1x256xf32>
    %c2 = arith.constant 2 : index
    %c0_2 = arith.constant 0 : index
    %2 = vector.load %arg3[%c2, %c0_2] : memref<9x256xf32, #tpu.memory_space<vmem>>, vector<1x256xf32>
    %c3 = arith.constant 3 : index
    %c0_3 = arith.constant 0 : index
    %3 = vector.load %arg3[%c3, %c0_3] : memref<9x256xf32, #tpu.memory_space<vmem>>, vector<1x256xf32>
    %c5 = arith.constant 5 : index
    %c0_4 = arith.constant 0 : index
    %4 = vector.load %arg3[%c5, %c0_4] : memref<9x256xf32, #tpu.memory_space<vmem>>, vector<1x256xf32>
    %c6 = arith.constant 6 : index
    %c0_5 = arith.constant 0 : index
    %5 = vector.load %arg3[%c6, %c0_5] : memref<9x256xf32, #tpu.memory_space<vmem>>, vector<1x256xf32>
    %c7 = arith.constant 7 : index
    %c0_6 = arith.constant 0 : index
    %6 = vector.load %arg3[%c7, %c0_6] : memref<9x256xf32, #tpu.memory_space<vmem>>, vector<1x256xf32>
    %c8 = arith.constant 8 : index
    %c0_7 = arith.constant 0 : index
    %7 = vector.load %arg3[%c8, %c0_7] : memref<9x256xf32, #tpu.memory_space<vmem>>, vector<1x256xf32>
    %c0_8 = arith.constant 0 : index
    %c0_9 = arith.constant 0 : index
    %8 = vector.load %arg1[%c0_8, %c0_9] : memref<64x256xf32, #tpu.memory_space<vmem>>, vector<16x256xf32>
    %c0_10 = arith.constant 0 : index
    %c0_11 = arith.constant 0 : index
    %9 = vector.load %arg2[%c0_10, %c0_11] : memref<64x10xf32, #tpu.memory_space<vmem>>, vector<16x10xf32>
    %10 = vector.extract_strided_slice %9 {offsets = [0, 4], sizes = [16, 1], strides = [1, 1]} : vector<16x10xf32> to vector<16x1xf32>
    %11 = vector.broadcast %10 : vector<16x1xf32> to vector<16x256xf32>
    %12 = arith.mulf %8, %11 : vector<16x256xf32>
    %13 = vector.extract_strided_slice %9 {offsets = [0, 9], sizes = [16, 1], strides = [1, 1]} : vector<16x10xf32> to vector<16x1xf32>
    %14 = vector.broadcast %13 : vector<16x1xf32> to vector<16x256xf32>
    %15 = arith.addf %12, %14 : vector<16x256xf32>
    %c17_i32 = arith.constant 17 : i32
    %16 = tpu.dynamic_rotate %8 by %c17_i32 dim 1 : vector<16x256xf32>, i32 -> vector<16x256xf32>
    %17 = vector.broadcast %0 : vector<1x256xf32> to vector<16x256xf32>
    %18 = arith.mulf %16, %17 : vector<16x256xf32>
    %19 = vector.extract_strided_slice %9 {offsets = [0, 0], sizes = [16, 1], strides = [1, 1]} : vector<16x10xf32> to vector<16x1xf32>
    %20 = vector.broadcast %19 : vector<16x1xf32> to vector<16x256xf32>
    %21 = arith.mulf %18, %20 : vector<16x256xf32>
    %22 = arith.addf %15, %21 : vector<16x256xf32>
    %c16_i32 = arith.constant 16 : i32
    %23 = tpu.dynamic_rotate %8 by %c16_i32 dim 1 : vector<16x256xf32>, i32 -> vector<16x256xf32>
    %24 = vector.broadcast %1 : vector<1x256xf32> to vector<16x256xf32>
    %25 = arith.mulf %23, %24 : vector<16x256xf32>
    %26 = vector.extract_strided_slice %9 {offsets = [0, 1], sizes = [16, 1], strides = [1, 1]} : vector<16x10xf32> to vector<16x1xf32>
    %27 = vector.broadcast %26 : vector<16x1xf32> to vector<16x256xf32>
    %28 = arith.mulf %25, %27 : vector<16x256xf32>
    %29 = arith.addf %22, %28 : vector<16x256xf32>
    %c15_i32 = arith.constant 15 : i32
    %30 = tpu.dynamic_rotate %8 by %c15_i32 dim 1 : vector<16x256xf32>, i32 -> vector<16x256xf32>
    %31 = vector.broadcast %2 : vector<1x256xf32> to vector<16x256xf32>
    %32 = arith.mulf %30, %31 : vector<16x256xf32>
    %33 = vector.extract_strided_slice %9 {offsets = [0, 2], sizes = [16, 1], strides = [1, 1]} : vector<16x10xf32> to vector<16x1xf32>
    %34 = vector.broadcast %33 : vector<16x1xf32> to vector<16x256xf32>
    %35 = arith.mulf %32, %34 : vector<16x256xf32>
    %36 = arith.addf %29, %35 : vector<16x256xf32>
    %c1_i32 = arith.constant 1 : i32
    %37 = tpu.dynamic_rotate %8 by %c1_i32 dim 1 : vector<16x256xf32>, i32 -> vector<16x256xf32>
    %38 = vector.broadcast %3 : vector<1x256xf32> to vector<16x256xf32>
    %39 = arith.mulf %37, %38 : vector<16x256xf32>
    %40 = vector.extract_strided_slice %9 {offsets = [0, 3], sizes = [16, 1], strides = [1, 1]} : vector<16x10xf32> to vector<16x1xf32>
    %41 = vector.broadcast %40 : vector<16x1xf32> to vector<16x256xf32>
    %42 = arith.mulf %39, %41 : vector<16x256xf32>
    %43 = arith.addf %36, %42 : vector<16x256xf32>
    %c255_i32 = arith.constant 255 : i32
    %44 = tpu.dynamic_rotate %8 by %c255_i32 dim 1 : vector<16x256xf32>, i32 -> vector<16x256xf32>
    %45 = vector.broadcast %4 : vector<1x256xf32> to vector<16x256xf32>
    %46 = arith.mulf %44, %45 : vector<16x256xf32>
    %47 = vector.extract_strided_slice %9 {offsets = [0, 5], sizes = [16, 1], strides = [1, 1]} : vector<16x10xf32> to vector<16x1xf32>
    %48 = vector.broadcast %47 : vector<16x1xf32> to vector<16x256xf32>
    %49 = arith.mulf %46, %48 : vector<16x256xf32>
    %50 = arith.addf %43, %49 : vector<16x256xf32>
    %c241_i32 = arith.constant 241 : i32
    %51 = tpu.dynamic_rotate %8 by %c241_i32 dim 1 : vector<16x256xf32>, i32 -> vector<16x256xf32>
    %52 = vector.broadcast %5 : vector<1x256xf32> to vector<16x256xf32>
    %53 = arith.mulf %51, %52 : vector<16x256xf32>
    %54 = vector.extract_strided_slice %9 {offsets = [0, 6], sizes = [16, 1], strides = [1, 1]} : vector<16x10xf32> to vector<16x1xf32>
    %55 = vector.broadcast %54 : vector<16x1xf32> to vector<16x256xf32>
    %56 = arith.mulf %53, %55 : vector<16x256xf32>
    %57 = arith.addf %50, %56 : vector<16x256xf32>
    %c240_i32 = arith.constant 240 : i32
    %58 = tpu.dynamic_rotate %8 by %c240_i32 dim 1 : vector<16x256xf32>, i32 -> vector<16x256xf32>
    %59 = vector.broadcast %6 : vector<1x256xf32> to vector<16x256xf32>
    %60 = arith.mulf %58, %59 : vector<16x256xf32>
    %61 = vector.extract_strided_slice %9 {offsets = [0, 7], sizes = [16, 1], strides = [1, 1]} : vector<16x10xf32> to vector<16x1xf32>
    %62 = vector.broadcast %61 : vector<16x1xf32> to vector<16x256xf32>
    %63 = arith.mulf %60, %62 : vector<16x256xf32>
    %64 = arith.addf %57, %63 : vector<16x256xf32>
    %c239_i32 = arith.constant 239 : i32
    %65 = tpu.dynamic_rotate %8 by %c239_i32 dim 1 : vector<16x256xf32>, i32 -> vector<16x256xf32>
    %66 = vector.broadcast %7 : vector<1x256xf32> to vector<16x256xf32>
    %67 = arith.mulf %65, %66 : vector<16x256xf32>
    %68 = vector.extract_strided_slice %9 {offsets = [0, 8], sizes = [16, 1], strides = [1, 1]} : vector<16x10xf32> to vector<16x1xf32>
    %69 = vector.broadcast %68 : vector<16x1xf32> to vector<16x256xf32>
    %70 = arith.mulf %67, %69 : vector<16x256xf32>
    %71 = arith.addf %64, %70 : vector<16x256xf32>
    %c0_12 = arith.constant 0 : index
    %c0_13 = arith.constant 0 : index
    %72 = vector.load %arg4[%c0_12, %c0_13] : memref<64x256xf32, #tpu.memory_space<vmem>>, vector<16x256xf32>
    tpu.vector_store %arg4[%c0_12, %c0_13], %71 {strides = array<i32>} : memref<64x256xf32, #tpu.memory_space<vmem>>, vector<16x256xf32>,
    %c16 = arith.constant 16 : index
    %c0_14 = arith.constant 0 : index
    %73 = vector.load %arg1[%c16, %c0_14] : memref<64x256xf32, #tpu.memory_space<vmem>>, vector<16x256xf32>
    %c16_15 = arith.constant 16 : index
    %c0_16 = arith.constant 0 : index
    %74 = vector.load %arg2[%c16_15, %c0_16] : memref<64x10xf32, #tpu.memory_space<vmem>>, vector<16x10xf32>
    %75 = vector.extract_strided_slice %74 {offsets = [0, 4], sizes = [16, 1], strides = [1, 1]} : vector<16x10xf32> to vector<16x1xf32>
    %76 = vector.broadcast %75 : vector<16x1xf32> to vector<16x256xf32>
    %77 = arith.mulf %73, %76 : vector<16x256xf32>
    %78 = vector.extract_strided_slice %74 {offsets = [0, 9], sizes = [16, 1], strides = [1, 1]} : vector<16x10xf32> to vector<16x1xf32>
    %79 = vector.broadcast %78 : vector<16x1xf32> to vector<16x256xf32>
    %80 = arith.addf %77, %79 : vector<16x256xf32>
    %c17_i32_17 = arith.constant 17 : i32
    %81 = tpu.dynamic_rotate %73 by %c17_i32_17 dim 1 : vector<16x256xf32>, i32 -> vector<16x256xf32>
    %82 = vector.broadcast %0 : vector<1x256xf32> to vector<16x256xf32>
    %83 = arith.mulf %81, %82 : vector<16x256xf32>
    %84 = vector.extract_strided_slice %74 {offsets = [0, 0], sizes = [16, 1], strides = [1, 1]} : vector<16x10xf32> to vector<16x1xf32>
    %85 = vector.broadcast %84 : vector<16x1xf32> to vector<16x256xf32>
    %86 = arith.mulf %83, %85 : vector<16x256xf32>
    %87 = arith.addf %80, %86 : vector<16x256xf32>
    %c16_i32_18 = arith.constant 16 : i32
    %88 = tpu.dynamic_rotate %73 by %c16_i32_18 dim 1 : vector<16x256xf32>, i32 -> vector<16x256xf32>
    %89 = vector.broadcast %1 : vector<1x256xf32> to vector<16x256xf32>
    %90 = arith.mulf %88, %89 : vector<16x256xf32>
    %91 = vector.extract_strided_slice %74 {offsets = [0, 1], sizes = [16, 1], strides = [1, 1]} : vector<16x10xf32> to vector<16x1xf32>
    %92 = vector.broadcast %91 : vector<16x1xf32> to vector<16x256xf32>
    %93 = arith.mulf %90, %92 : vector<16x256xf32>
    %94 = arith.addf %87, %93 : vector<16x256xf32>
    %c15_i32_19 = arith.constant 15 : i32
    %95 = tpu.dynamic_rotate %73 by %c15_i32_19 dim 1 : vector<16x256xf32>, i32 -> vector<16x256xf32>
    %96 = vector.broadcast %2 : vector<1x256xf32> to vector<16x256xf32>
    %97 = arith.mulf %95, %96 : vector<16x256xf32>
    %98 = vector.extract_strided_slice %74 {offsets = [0, 2], sizes = [16, 1], strides = [1, 1]} : vector<16x10xf32> to vector<16x1xf32>
    %99 = vector.broadcast %98 : vector<16x1xf32> to vector<16x256xf32>
    %100 = arith.mulf %97, %99 : vector<16x256xf32>
    %101 = arith.addf %94, %100 : vector<16x256xf32>
    %c1_i32_20 = arith.constant 1 : i32
    %102 = tpu.dynamic_rotate %73 by %c1_i32_20 dim 1 : vector<16x256xf32>, i32 -> vector<16x256xf32>
    %103 = vector.broadcast %3 : vector<1x256xf32> to vector<16x256xf32>
    %104 = arith.mulf %102, %103 : vector<16x256xf32>
    %105 = vector.extract_strided_slice %74 {offsets = [0, 3], sizes = [16, 1], strides = [1, 1]} : vector<16x10xf32> to vector<16x1xf32>
    %106 = vector.broadcast %105 : vector<16x1xf32> to vector<16x256xf32>
    %107 = arith.mulf %104, %106 : vector<16x256xf32>
    %108 = arith.addf %101, %107 : vector<16x256xf32>
    %c255_i32_21 = arith.constant 255 : i32
    %109 = tpu.dynamic_rotate %73 by %c255_i32_21 dim 1 : vector<16x256xf32>, i32 -> vector<16x256xf32>
    %110 = vector.broadcast %4 : vector<1x256xf32> to vector<16x256xf32>
    %111 = arith.mulf %109, %110 : vector<16x256xf32>
    %112 = vector.extract_strided_slice %74 {offsets = [0, 5], sizes = [16, 1], strides = [1, 1]} : vector<16x10xf32> to vector<16x1xf32>
    %113 = vector.broadcast %112 : vector<16x1xf32> to vector<16x256xf32>
    %114 = arith.mulf %111, %113 : vector<16x256xf32>
    %115 = arith.addf %108, %114 : vector<16x256xf32>
    %c241_i32_22 = arith.constant 241 : i32
    %116 = tpu.dynamic_rotate %73 by %c241_i32_22 dim 1 : vector<16x256xf32>, i32 -> vector<16x256xf32>
    %117 = vector.broadcast %5 : vector<1x256xf32> to vector<16x256xf32>
    %118 = arith.mulf %116, %117 : vector<16x256xf32>
    %119 = vector.extract_strided_slice %74 {offsets = [0, 6], sizes = [16, 1], strides = [1, 1]} : vector<16x10xf32> to vector<16x1xf32>
    %120 = vector.broadcast %119 : vector<16x1xf32> to vector<16x256xf32>
    %121 = arith.mulf %118, %120 : vector<16x256xf32>
    %122 = arith.addf %115, %121 : vector<16x256xf32>
    %c240_i32_23 = arith.constant 240 : i32
    %123 = tpu.dynamic_rotate %73 by %c240_i32_23 dim 1 : vector<16x256xf32>, i32 -> vector<16x256xf32>
    %124 = vector.broadcast %6 : vector<1x256xf32> to vector<16x256xf32>
    %125 = arith.mulf %123, %124 : vector<16x256xf32>
    %126 = vector.extract_strided_slice %74 {offsets = [0, 7], sizes = [16, 1], strides = [1, 1]} : vector<16x10xf32> to vector<16x1xf32>
    %127 = vector.broadcast %126 : vector<16x1xf32> to vector<16x256xf32>
    %128 = arith.mulf %125, %127 : vector<16x256xf32>
    %129 = arith.addf %122, %128 : vector<16x256xf32>
    %c239_i32_24 = arith.constant 239 : i32
    %130 = tpu.dynamic_rotate %73 by %c239_i32_24 dim 1 : vector<16x256xf32>, i32 -> vector<16x256xf32>
    %131 = vector.broadcast %7 : vector<1x256xf32> to vector<16x256xf32>
    %132 = arith.mulf %130, %131 : vector<16x256xf32>
    %133 = vector.extract_strided_slice %74 {offsets = [0, 8], sizes = [16, 1], strides = [1, 1]} : vector<16x10xf32> to vector<16x1xf32>
    %134 = vector.broadcast %133 : vector<16x1xf32> to vector<16x256xf32>
    %135 = arith.mulf %132, %134 : vector<16x256xf32>
    %136 = arith.addf %129, %135 : vector<16x256xf32>
    %c16_25 = arith.constant 16 : index
    %c0_26 = arith.constant 0 : index
    %137 = vector.load %arg4[%c16_25, %c0_26] : memref<64x256xf32, #tpu.memory_space<vmem>>, vector<16x256xf32>
    tpu.vector_store %arg4[%c16_25, %c0_26], %136 {strides = array<i32>} : memref<64x256xf32, #tpu.memory_space<vmem>>, vector<16x256xf32>,
    %c32 = arith.constant 32 : index
    %c0_27 = arith.constant 0 : index
    %138 = vector.load %arg1[%c32, %c0_27] : memref<64x256xf32, #tpu.memory_space<vmem>>, vector<16x256xf32>
    %c32_28 = arith.constant 32 : index
    %c0_29 = arith.constant 0 : index
    %139 = vector.load %arg2[%c32_28, %c0_29] : memref<64x10xf32, #tpu.memory_space<vmem>>, vector<16x10xf32>
    %140 = vector.extract_strided_slice %139 {offsets = [0, 4], sizes = [16, 1], strides = [1, 1]} : vector<16x10xf32> to vector<16x1xf32>
    %141 = vector.broadcast %140 : vector<16x1xf32> to vector<16x256xf32>
    %142 = arith.mulf %138, %141 : vector<16x256xf32>
    %143 = vector.extract_strided_slice %139 {offsets = [0, 9], sizes = [16, 1], strides = [1, 1]} : vector<16x10xf32> to vector<16x1xf32>
    %144 = vector.broadcast %143 : vector<16x1xf32> to vector<16x256xf32>
    %145 = arith.addf %142, %144 : vector<16x256xf32>
    %c17_i32_30 = arith.constant 17 : i32
    %146 = tpu.dynamic_rotate %138 by %c17_i32_30 dim 1 : vector<16x256xf32>, i32 -> vector<16x256xf32>
    %147 = vector.broadcast %0 : vector<1x256xf32> to vector<16x256xf32>
    %148 = arith.mulf %146, %147 : vector<16x256xf32>
    %149 = vector.extract_strided_slice %139 {offsets = [0, 0], sizes = [16, 1], strides = [1, 1]} : vector<16x10xf32> to vector<16x1xf32>
    %150 = vector.broadcast %149 : vector<16x1xf32> to vector<16x256xf32>
    %151 = arith.mulf %148, %150 : vector<16x256xf32>
    %152 = arith.addf %145, %151 : vector<16x256xf32>
    %c16_i32_31 = arith.constant 16 : i32
    %153 = tpu.dynamic_rotate %138 by %c16_i32_31 dim 1 : vector<16x256xf32>, i32 -> vector<16x256xf32>
    %154 = vector.broadcast %1 : vector<1x256xf32> to vector<16x256xf32>
    %155 = arith.mulf %153, %154 : vector<16x256xf32>
    %156 = vector.extract_strided_slice %139 {offsets = [0, 1], sizes = [16, 1], strides = [1, 1]} : vector<16x10xf32> to vector<16x1xf32>
    %157 = vector.broadcast %156 : vector<16x1xf32> to vector<16x256xf32>
    %158 = arith.mulf %155, %157 : vector<16x256xf32>
    %159 = arith.addf %152, %158 : vector<16x256xf32>
    %c15_i32_32 = arith.constant 15 : i32
    %160 = tpu.dynamic_rotate %138 by %c15_i32_32 dim 1 : vector<16x256xf32>, i32 -> vector<16x256xf32>
    %161 = vector.broadcast %2 : vector<1x256xf32> to vector<16x256xf32>
    %162 = arith.mulf %160, %161 : vector<16x256xf32>
    %163 = vector.extract_strided_slice %139 {offsets = [0, 2], sizes = [16, 1], strides = [1, 1]} : vector<16x10xf32> to vector<16x1xf32>
    %164 = vector.broadcast %163 : vector<16x1xf32> to vector<16x256xf32>
    %165 = arith.mulf %162, %164 : vector<16x256xf32>
    %166 = arith.addf %159, %165 : vector<16x256xf32>
    %c1_i32_33 = arith.constant 1 : i32
    %167 = tpu.dynamic_rotate %138 by %c1_i32_33 dim 1 : vector<16x256xf32>, i32 -> vector<16x256xf32>
    %168 = vector.broadcast %3 : vector<1x256xf32> to vector<16x256xf32>
    %169 = arith.mulf %167, %168 : vector<16x256xf32>
    %170 = vector.extract_strided_slice %139 {offsets = [0, 3], sizes = [16, 1], strides = [1, 1]} : vector<16x10xf32> to vector<16x1xf32>
    %171 = vector.broadcast %170 : vector<16x1xf32> to vector<16x256xf32>
    %172 = arith.mulf %169, %171 : vector<16x256xf32>
    %173 = arith.addf %166, %172 : vector<16x256xf32>
    %c255_i32_34 = arith.constant 255 : i32
    %174 = tpu.dynamic_rotate %138 by %c255_i32_34 dim 1 : vector<16x256xf32>, i32 -> vector<16x256xf32>
    %175 = vector.broadcast %4 : vector<1x256xf32> to vector<16x256xf32>
    %176 = arith.mulf %174, %175 : vector<16x256xf32>
    %177 = vector.extract_strided_slice %139 {offsets = [0, 5], sizes = [16, 1], strides = [1, 1]} : vector<16x10xf32> to vector<16x1xf32>
    %178 = vector.broadcast %177 : vector<16x1xf32> to vector<16x256xf32>
    %179 = arith.mulf %176, %178 : vector<16x256xf32>
    %180 = arith.addf %173, %179 : vector<16x256xf32>
    %c241_i32_35 = arith.constant 241 : i32
    %181 = tpu.dynamic_rotate %138 by %c241_i32_35 dim 1 : vector<16x256xf32>, i32 -> vector<16x256xf32>
    %182 = vector.broadcast %5 : vector<1x256xf32> to vector<16x256xf32>
    %183 = arith.mulf %181, %182 : vector<16x256xf32>
    %184 = vector.extract_strided_slice %139 {offsets = [0, 6], sizes = [16, 1], strides = [1, 1]} : vector<16x10xf32> to vector<16x1xf32>
    %185 = vector.broadcast %184 : vector<16x1xf32> to vector<16x256xf32>
    %186 = arith.mulf %183, %185 : vector<16x256xf32>
    %187 = arith.addf %180, %186 : vector<16x256xf32>
    %c240_i32_36 = arith.constant 240 : i32
    %188 = tpu.dynamic_rotate %138 by %c240_i32_36 dim 1 : vector<16x256xf32>, i32 -> vector<16x256xf32>
    %189 = vector.broadcast %6 : vector<1x256xf32> to vector<16x256xf32>
    %190 = arith.mulf %188, %189 : vector<16x256xf32>
    %191 = vector.extract_strided_slice %139 {offsets = [0, 7], sizes = [16, 1], strides = [1, 1]} : vector<16x10xf32> to vector<16x1xf32>
    %192 = vector.broadcast %191 : vector<16x1xf32> to vector<16x256xf32>
    %193 = arith.mulf %190, %192 : vector<16x256xf32>
    %194 = arith.addf %187, %193 : vector<16x256xf32>
    %c239_i32_37 = arith.constant 239 : i32
    %195 = tpu.dynamic_rotate %138 by %c239_i32_37 dim 1 : vector<16x256xf32>, i32 -> vector<16x256xf32>
    %196 = vector.broadcast %7 : vector<1x256xf32> to vector<16x256xf32>
    %197 = arith.mulf %195, %196 : vector<16x256xf32>
    %198 = vector.extract_strided_slice %139 {offsets = [0, 8], sizes = [16, 1], strides = [1, 1]} : vector<16x10xf32> to vector<16x1xf32>
    %199 = vector.broadcast %198 : vector<16x1xf32> to vector<16x256xf32>
    %200 = arith.mulf %197, %199 : vector<16x256xf32>
    %201 = arith.addf %194, %200 : vector<16x256xf32>
    %c32_38 = arith.constant 32 : index
    %c0_39 = arith.constant 0 : index
    %202 = vector.load %arg4[%c32_38, %c0_39] : memref<64x256xf32, #tpu.memory_space<vmem>>, vector<16x256xf32>
    tpu.vector_store %arg4[%c32_38, %c0_39], %201 {strides = array<i32>} : memref<64x256xf32, #tpu.memory_space<vmem>>, vector<16x256xf32>,
    %c48 = arith.constant 48 : index
    %c0_40 = arith.constant 0 : index
    %203 = vector.load %arg1[%c48, %c0_40] : memref<64x256xf32, #tpu.memory_space<vmem>>, vector<16x256xf32>
    %c48_41 = arith.constant 48 : index
    %c0_42 = arith.constant 0 : index
    %204 = vector.load %arg2[%c48_41, %c0_42] : memref<64x10xf32, #tpu.memory_space<vmem>>, vector<16x10xf32>
    %205 = vector.extract_strided_slice %204 {offsets = [0, 4], sizes = [16, 1], strides = [1, 1]} : vector<16x10xf32> to vector<16x1xf32>
    %206 = vector.broadcast %205 : vector<16x1xf32> to vector<16x256xf32>
    %207 = arith.mulf %203, %206 : vector<16x256xf32>
    %208 = vector.extract_strided_slice %204 {offsets = [0, 9], sizes = [16, 1], strides = [1, 1]} : vector<16x10xf32> to vector<16x1xf32>
    %209 = vector.broadcast %208 : vector<16x1xf32> to vector<16x256xf32>
    %210 = arith.addf %207, %209 : vector<16x256xf32>
    %c17_i32_43 = arith.constant 17 : i32
    %211 = tpu.dynamic_rotate %203 by %c17_i32_43 dim 1 : vector<16x256xf32>, i32 -> vector<16x256xf32>
    %212 = vector.broadcast %0 : vector<1x256xf32> to vector<16x256xf32>
    %213 = arith.mulf %211, %212 : vector<16x256xf32>
    %214 = vector.extract_strided_slice %204 {offsets = [0, 0], sizes = [16, 1], strides = [1, 1]} : vector<16x10xf32> to vector<16x1xf32>
    %215 = vector.broadcast %214 : vector<16x1xf32> to vector<16x256xf32>
    %216 = arith.mulf %213, %215 : vector<16x256xf32>
    %217 = arith.addf %210, %216 : vector<16x256xf32>
    %c16_i32_44 = arith.constant 16 : i32
    %218 = tpu.dynamic_rotate %203 by %c16_i32_44 dim 1 : vector<16x256xf32>, i32 -> vector<16x256xf32>
    %219 = vector.broadcast %1 : vector<1x256xf32> to vector<16x256xf32>
    %220 = arith.mulf %218, %219 : vector<16x256xf32>
    %221 = vector.extract_strided_slice %204 {offsets = [0, 1], sizes = [16, 1], strides = [1, 1]} : vector<16x10xf32> to vector<16x1xf32>
    %222 = vector.broadcast %221 : vector<16x1xf32> to vector<16x256xf32>
    %223 = arith.mulf %220, %222 : vector<16x256xf32>
    %224 = arith.addf %217, %223 : vector<16x256xf32>
    %c15_i32_45 = arith.constant 15 : i32
    %225 = tpu.dynamic_rotate %203 by %c15_i32_45 dim 1 : vector<16x256xf32>, i32 -> vector<16x256xf32>
    %226 = vector.broadcast %2 : vector<1x256xf32> to vector<16x256xf32>
    %227 = arith.mulf %225, %226 : vector<16x256xf32>
    %228 = vector.extract_strided_slice %204 {offsets = [0, 2], sizes = [16, 1], strides = [1, 1]} : vector<16x10xf32> to vector<16x1xf32>
    %229 = vector.broadcast %228 : vector<16x1xf32> to vector<16x256xf32>
    %230 = arith.mulf %227, %229 : vector<16x256xf32>
    %231 = arith.addf %224, %230 : vector<16x256xf32>
    %c1_i32_46 = arith.constant 1 : i32
    %232 = tpu.dynamic_rotate %203 by %c1_i32_46 dim 1 : vector<16x256xf32>, i32 -> vector<16x256xf32>
    %233 = vector.broadcast %3 : vector<1x256xf32> to vector<16x256xf32>
    %234 = arith.mulf %232, %233 : vector<16x256xf32>
    %235 = vector.extract_strided_slice %204 {offsets = [0, 3], sizes = [16, 1], strides = [1, 1]} : vector<16x10xf32> to vector<16x1xf32>
    %236 = vector.broadcast %235 : vector<16x1xf32> to vector<16x256xf32>
    %237 = arith.mulf %234, %236 : vector<16x256xf32>
    %238 = arith.addf %231, %237 : vector<16x256xf32>
    %c255_i32_47 = arith.constant 255 : i32
    %239 = tpu.dynamic_rotate %203 by %c255_i32_47 dim 1 : vector<16x256xf32>, i32 -> vector<16x256xf32>
    %240 = vector.broadcast %4 : vector<1x256xf32> to vector<16x256xf32>
    %241 = arith.mulf %239, %240 : vector<16x256xf32>
    %242 = vector.extract_strided_slice %204 {offsets = [0, 5], sizes = [16, 1], strides = [1, 1]} : vector<16x10xf32> to vector<16x1xf32>
    %243 = vector.broadcast %242 : vector<16x1xf32> to vector<16x256xf32>
    %244 = arith.mulf %241, %243 : vector<16x256xf32>
    %245 = arith.addf %238, %244 : vector<16x256xf32>
    %c241_i32_48 = arith.constant 241 : i32
    %246 = tpu.dynamic_rotate %203 by %c241_i32_48 dim 1 : vector<16x256xf32>, i32 -> vector<16x256xf32>
    %247 = vector.broadcast %5 : vector<1x256xf32> to vector<16x256xf32>
    %248 = arith.mulf %246, %247 : vector<16x256xf32>
    %249 = vector.extract_strided_slice %204 {offsets = [0, 6], sizes = [16, 1], strides = [1, 1]} : vector<16x10xf32> to vector<16x1xf32>
    %250 = vector.broadcast %249 : vector<16x1xf32> to vector<16x256xf32>
    %251 = arith.mulf %248, %250 : vector<16x256xf32>
    %252 = arith.addf %245, %251 : vector<16x256xf32>
    %c240_i32_49 = arith.constant 240 : i32
    %253 = tpu.dynamic_rotate %203 by %c240_i32_49 dim 1 : vector<16x256xf32>, i32 -> vector<16x256xf32>
    %254 = vector.broadcast %6 : vector<1x256xf32> to vector<16x256xf32>
    %255 = arith.mulf %253, %254 : vector<16x256xf32>
    %256 = vector.extract_strided_slice %204 {offsets = [0, 7], sizes = [16, 1], strides = [1, 1]} : vector<16x10xf32> to vector<16x1xf32>
    %257 = vector.broadcast %256 : vector<16x1xf32> to vector<16x256xf32>
    %258 = arith.mulf %255, %257 : vector<16x256xf32>
    %259 = arith.addf %252, %258 : vector<16x256xf32>
    %c239_i32_50 = arith.constant 239 : i32
    %260 = tpu.dynamic_rotate %203 by %c239_i32_50 dim 1 : vector<16x256xf32>, i32 -> vector<16x256xf32>
    %261 = vector.broadcast %7 : vector<1x256xf32> to vector<16x256xf32>
    %262 = arith.mulf %260, %261 : vector<16x256xf32>
    %263 = vector.extract_strided_slice %204 {offsets = [0, 8], sizes = [16, 1], strides = [1, 1]} : vector<16x10xf32> to vector<16x1xf32>
    %264 = vector.broadcast %263 : vector<16x1xf32> to vector<16x256xf32>
    %265 = arith.mulf %262, %264 : vector<16x256xf32>
    %266 = arith.addf %259, %265 : vector<16x256xf32>
    %c48_51 = arith.constant 48 : index
    %c0_52 = arith.constant 0 : index
    %267 = vector.load %arg4[%c48_51, %c0_52] : memref<64x256xf32, #tpu.memory_space<vmem>>, vector<16x256xf32>
    tpu.vector_store %arg4[%c48_51, %c0_52], %266 {strides = array<i32>} : memref<64x256xf32, #tpu.memory_space<vmem>>, vector<16x256xf32>,
    return
  }
  func.func @transform_0(%arg0: i32) -> (i32, i32) {
    %c0_i32 = arith.constant 0 : i32
    %c0_i32_0 = arith.constant 0 : i32
    return %arg0, %c0_i32 : i32, i32
  }
  func.func @transform_1(%arg0: i32) -> (i32, i32) {
    %c0_i32 = arith.constant 0 : i32
    %c0_i32_0 = arith.constant 0 : i32
    return %arg0, %c0_i32 : i32, i32
  }
  func.func @transform_2(%arg0: i32) -> (i32, i32) {
    %c0_i32 = arith.constant 0 : i32
    %c0_i32_0 = arith.constant 0 : i32
    %c0_i32_1 = arith.constant 0 : i32
    return %c0_i32, %c0_i32_0 : i32, i32
  }
  func.func @transform_3(%arg0: i32) -> (i32, i32) {
    %c0_i32 = arith.constant 0 : i32
    %c0_i32_0 = arith.constant 0 : i32
    return %arg0, %c0_i32 : i32, i32
  }
}

</mosaic_0001>

<llo_original>
// kernel: _lambda_.1
$region0: #{_lambda_.1}
  #allocation0 [shape = 'u32[]', space=smem, size = 0x4, offset = 0x4, fixed_abs, tag = 'smem constant byte address 0x4 - core index']
  #allocation1 [shape = 'u32[72,128]{1,0:T(1,128)}', space=vmem, size = 0x9000, scoped, tag = 'internal scratch']
  %s0 = inlined_call_operand.vmem [shape: f32[256,256], index: 0, kind: input, shape index: {}]
  %s1 = inlined_call_operand.vmem [shape: f32[256,10], index: 1, kind: input, shape index: {}]
  %s2 = inlined_call_operand.vmem [shape: f32[9,256], index: 2, kind: input, shape index: {}]
  %s3 = inlined_call_operand.vmem [shape: f32[256,256], index: 3, kind: output, shape index: {}]
  %s4 = sld [smem:[#allocation0]]
  $region45: #{_lambda_.1} parent=0
    _
  %s6 = ssub.s32 1, %s4
  %s7 = scalar_select 0, %s6, %s4
  loop: start=0, step=1, limit=6
  $region2: #{_lambda_.1} parent=0 // loop_pre_header
    _
  $region3: #{_lambda_.1} parent=0 // loop_header
    %s9 = sphi 0, %s13
    %p10 = scmp.ge.s32.totalorder %s9, 6
    %s19 = sphi 0, %s21
    %s22 = sphi 0, %s19
    %s23 = sphi 0, %s22
    %s39 = sphi 0, %s23
    %s45 = sphi 0, %s47
    %s48 = sphi 0, %s45
    %s49 = sphi 0, %s48
    %s65 = sphi 0, %s49
    %s69 = sphi 0, %s69
    %s71 = sphi 0, %s69
    %s72 = sphi 0, %s71
    %s86 = sphi 0, %s72
    %s92 = sphi 0, %s94
    %s95 = sphi 0, %s92
    %s96 = sphi 0, %s95
    %s112 = sphi 0, %s96
  $region4: #{_lambda_.1} parent=0 // loop_header_branch
    %12 = sbr.rel (%p10) target = $region8
  $region5: #{_lambda_.1} parent=0 // loop_body
    %s14 = ssub.s32 %s9, 1
    %s15 = ssub.s32 %s9, 2
    %s16 = sadd.s32 %s9, 1
    %s17 = ssub.s32 %s9, %s16
    %p18 = scmp.eq.s32.totalorder %s17, 0
    %s20 = sadd.s32 %s19, 1
    %s21 = scalar_select %p18, %s19, %s20
    %p24 = pneg %p18
    %p25 = scmp.eq.s32.totalorder %s9, 3
    %p26 = por %p24, %p25
    %p27 = scmp.ne.s32.totalorder %s19, %s22
    %p28 = scmp.eq.s32.totalorder %s9, 0
    %p29 = por %p27, %p28
    %p30 = scmp.ne.s32.totalorder %s19, %s22
    %p31 = scmp.eq.s32.totalorder %s14, 3
    %p32 = por %p30, %p31
    %p33 = scmp.ne.s32.totalorder %s22, %s23
    %p34 = scmp.eq.s32.totalorder %s14, 0
    %p35 = por %p33, %p34
    %p36 = scmp.ne.s32.totalorder %s22, %s23
    %p37 = scmp.eq.s32.totalorder %s15, 3
    %p38 = por %p36, %p37
    %p40 = scmp.ne.s32.totalorder %s23, %s39
    %p41 = scmp.eq.s32.totalorder %s15, 0
    %p42 = por %p40, %p41
    %s43 = ssub.s32 %s9, %s16
    %p44 = scmp.eq.s32.totalorder %s43, 0
    %s46 = sadd.s32 %s45, 1
    %s47 = scalar_select %p44, %s45, %s46
    %p50 = pneg %p44
    %p51 = scmp.eq.s32.totalorder %s9, 3
    %p52 = por %p50, %p51
    %p53 = scmp.ne.s32.totalorder %s45, %s48
    %p54 = scmp.eq.s32.totalorder %s9, 0
    %p55 = por %p53, %p54
    %p56 = scmp.ne.s32.totalorder %s45, %s48
    %p57 = scmp.eq.s32.totalorder %s14, 3
    %p58 = por %p56, %p57
    %p59 = scmp.ne.s32.totalorder %s48, %s49
    %p60 = scmp.eq.s32.totalorder %s14, 0
    %p61 = por %p59, %p60
    %p62 = scmp.ne.s32.totalorder %s48, %s49
    %p63 = scmp.eq.s32.totalorder %s15, 3
    %p64 = por %p62, %p63
    %p66 = scmp.ne.s32.totalorder %s49, %s65
    %p67 = scmp.eq.s32.totalorder %s15, 0
    %p68 = por %p66, %p67
    %s70 = sadd.s32 %s69, 1
    %p73 = scmp.eq.s32.totalorder %s9, 3
    %p74 = scmp.ne.s32.totalorder %s69, %s71
    %p75 = scmp.eq.s32.totalorder %s9, 0
    %p76 = por %p74, %p75
    %p77 = scmp.ne.s32.totalorder %s69, %s71
    %p78 = scmp.eq.s32.totalorder %s14, 3
    %p79 = por %p77, %p78
    %p80 = scmp.ne.s32.totalorder %s71, %s72
    %p81 = scmp.eq.s32.totalorder %s14, 0
    %p82 = por %p80, %p81
    %p83 = scmp.ne.s32.totalorder %s71, %s72
    %p84 = scmp.eq.s32.totalorder %s15, 3
    %p85 = por %p83, %p84
    %p87 = scmp.ne.s32.totalorder %s72, %s86
    %p88 = scmp.eq.s32.totalorder %s15, 0
    %p89 = por %p87, %p88
    %s90 = ssub.s32 %s9, %s16
    %p91 = scmp.eq.s32.totalorder %s90, 0
    %s93 = sadd.s32 %s92, 1
    %s94 = scalar_select %p91, %s92, %s93
    %p97 = pneg %p91
    %p98 = scmp.eq.s32.totalorder %s9, 3
    %p99 = por %p97, %p98
    %p100 = scmp.ne.s32.totalorder %s92, %s95
    %p101 = scmp.eq.s32.totalorder %s9, 0
    %p102 = por %p100, %p101
    %p103 = scmp.ne.s32.totalorder %s92, %s95
    %p104 = scmp.eq.s32.totalorder %s14, 3
    %p105 = por %p103, %p104
    %p106 = scmp.ne.s32.totalorder %s95, %s96
    %p107 = scmp.eq.s32.totalorder %s14, 0
    %p108 = por %p106, %p107
    %p109 = scmp.ne.s32.totalorder %s95, %s96
    %p110 = scmp.eq.s32.totalorder %s15, 3
    %p111 = por %p109, %p110
    %p113 = scmp.ne.s32.totalorder %s96, %s112
    %p114 = scmp.eq.s32.totalorder %s15, 0
    %p115 = por %p113, %p114
    %p116 = scmp.le.s32.totalorder 1, %s9
    %p117 = scmp.lt.s32.totalorder %s9, 5
    %p118 = pnand %p116, %p117
    %p119 = pneg %p118
    // Predicated region
    $region9: #{_lambda_.1} parent=5 // pred_check
      _
    $region10: #{_lambda_.1} parent=5 // pred_check_branch
      %121 = sbr.rel (%p118) target = $region12
    $region11: #{_lambda_.1} parent=5 // pred_region
      %s122 = ssub.s32 %s9, 1
      // Predicated region
      $region13: #{_lambda_.1} parent=11 // pred_check
        %p123 = pneg %p82
      $region14: #{_lambda_.1} parent=11 // pred_check_branch
        %125 = sbr.rel (%p123) target = $region16
      $region15: #{_lambda_.1} parent=11 // pred_region
        _
      $region16: #{_lambda_.1} parent=11 // pred_fallthru
        _
    $region12: #{_lambda_.1} parent=5 // pred_fallthru
      _
    %p126 = scmp.lt.s32.totalorder %s9, 4
    // Predicated region
    $region17: #{_lambda_.1} parent=5 // pred_check
      %p127 = pneg %p126
    $region18: #{_lambda_.1} parent=5 // pred_check_branch
      %129 = sbr.rel (%p127) target = $region20
    $region19: #{_lambda_.1} parent=5 // pred_region
      // Predicated region
      $region21: #{_lambda_.1} parent=19 // pred_check
        %p130 = pneg %p29
      $region22: #{_lambda_.1} parent=19 // pred_check_branch
        %132 = sbr.rel (%p130) target = $region24
      $region23: #{_lambda_.1} parent=19 // pred_region
        %s133 = smul.u32 8, %s9
        %p134 = scmp.lt.s32.totalorder %s133, 31
        %s135 = scalar_select %p134, %s133, 31
        %s136 = smul.addr %s135, 2
        %s137 = smul.addr %s136, 8
        %s138 = scalar_lea.vmem %s0, %s137
        %s139 = smul.u32 8, %s9
      $region24: #{_lambda_.1} parent=19 // pred_fallthru
        _
      // Predicated region
      $region25: #{_lambda_.1} parent=19 // pred_check
        %p140 = pneg %p55
      $region26: #{_lambda_.1} parent=19 // pred_check_branch
        %142 = sbr.rel (%p140) target = $region28
      $region27: #{_lambda_.1} parent=19 // pred_region
        %s143 = smul.u32 8, %s9
        %p144 = scmp.lt.s32.totalorder %s143, 31
        %s145 = scalar_select %p144, %s143, 31
        %s146 = smul.addr %s145, 8
        %s147 = scalar_lea.vmem %s1, %s146
        %s148 = smul.u32 8, %s9
      $region28: #{_lambda_.1} parent=19 // pred_fallthru
        _
    $region20: #{_lambda_.1} parent=5 // pred_fallthru
      _
    %p149 = scmp.le.s32.totalorder 1, %s9
    %p150 = scmp.lt.s32.totalorder %s9, 5
    %p151 = pnand %p149, %p150
    %p152 = pneg %p151
    // Predicated region
    $region29: #{_lambda_.1} parent=5 // pred_check
      _
    $region30: #{_lambda_.1} parent=5 // pred_check_branch
      %154 = sbr.rel (%p151) target = $region32
    $region31: #{_lambda_.1} parent=5 // pred_region
      %s155 = ssub.s32 %s9, 1
      %s156 = smul.u32 8, %s14
      %p157 = scmp.lt.s32.totalorder %s156, 31
      %s158 = scalar_select %p157, %s156, 31
      %s159 = smul.addr %s158, 2
      %s160 = smul.addr %s159, 8
      %s161 = scalar_lea.vmem %s0, %s160
      %p162 = pneg %p35
      %p163 = pneg %p32
      %s164 = smul.u32 8, %s14
      %p165 = scmp.lt.s32.totalorder %s164, 31
      %s166 = scalar_select %p165, %s164, 31
      %s167 = smul.addr %s166, 8
      %s168 = scalar_lea.vmem %s1, %s167
      %p169 = pneg %p61
      %p170 = pneg %p58
      %p171 = pneg %p82
      %p172 = pneg %p79
      %p173 = pneg %p108
      %p174 = pneg %p105
      %s175 = smul.u32 8, %s14
      %p176 = scmp.lt.s32.totalorder %s175, 31
      %s177 = scalar_select %p176, %s175, 31
      %s178 = smul.addr %s177, 2
      %s179 = smul.addr %s178, 8
      %s180 = scalar_lea.vmem %s3, %s179
      %s181 = smul.u32 8, %s14
      %p182 = scmp.lt.s32.totalorder %s181, 31
      %s183 = scalar_select %p182, %s181, 31
      %s184 = smul.addr %s183, 2
      %s185 = smul.addr %s184, 8
      %s186 = scalar_lea.vmem %s0, %s185
      %s187 = smul.u32 8, %s14
      %s188 = smul.u32 8, %s14
      %p189 = scmp.lt.s32.totalorder %s188, 31
      %s190 = scalar_select %p189, %s188, 31
      %s191 = smul.addr %s190, 8
      %s192 = scalar_lea.vmem %s1, %s191
      %s193 = smul.u32 8, %s14
      %s194 = smul.u32 8, %s14
      %p195 = scmp.lt.s32.totalorder %s194, 31
      %s196 = scalar_select %p195, %s194, 31
      %s197 = smul.addr %s196, 2
      %s198 = smul.addr %s197, 8
      %s199 = scalar_lea.vmem %s3, %s198
      %s200 = smul.u32 8, %s14
      %v201 = vld [vmem:[%s2] ss:$8 sm:$0x3]
      %s202 = scalar_lea.vmem %s2, 1
      %v203 = vld [vmem:[%s202] ss:$8 sm:$0x3]
      %s204 = scalar_lea.vmem %s2, 2
      %v205 = vld [vmem:[%s204] ss:$8 sm:$0x3]
      %s206 = scalar_lea.vmem %s2, 3
      %v207 = vld [vmem:[%s206] ss:$8 sm:$0x3]
      %s208 = scalar_lea.vmem %s2, 5
      %v209 = vld [vmem:[%s208] ss:$8 sm:$0x3]
      %s210 = scalar_lea.vmem %s2, 6
      %v211 = vld [vmem:[%s210] ss:$8 sm:$0x3]
      %s212 = scalar_lea.vmem %s2, 7
      %v213 = vld [vmem:[%s212] ss:$8 sm:$0x3]
      %s214 = scalar_lea.vmem %s2, 16
      %v215 = vld [vmem:[%s214] ss:$8 sm:$0x3]
      %v216 = vld [vmem:[%s186] sm:$0xff]
      %v217 = vld [vmem:[%s186 + $0x8] sm:$0xff]
      %v218 = vld [vmem:[%s186 + $0x10] sm:$0xff]
      %v219 = vld [vmem:[%s186 + $0x18] sm:$0xff]
      %v220 = vld [vmem:[%s192] sm:$0xff]
      %v221 = vld [vmem:[%s192 + $0x8] sm:$0xff]
      %223 = vset.pattern.permute.xlu0 4
      %224 = vperm.xlu0 %223, %v220
      %v225 = vpop.permute.xlu0 %224
      %228 = vset.pattern.permute.xlu0 4
      %229 = vperm.xlu0 %228, %v221
      %v230 = vpop.permute.xlu0 %229
      %v232 = vmul.f32 %v216, %v225
      %v233 = vmul.f32 %v217, %v225
      %v234 = vmul.f32 %v218, %v230
      %v235 = vmul.f32 %v219, %v230
      %236 = vset.pattern.permute.xlu0 9
      %237 = vperm.xlu0 %236, %v220
      %v238 = vpop.permute.xlu0 %237
      %240 = vset.pattern.permute.xlu0 9
      %241 = vperm.xlu0 %240, %v221
      %v242 = vpop.permute.xlu0 %241
      %v244 = vadd.f32 %v232, %v238
      %v245 = vadd.f32 %v233, %v238
      %v246 = vadd.f32 %v234, %v242
      %v247 = vadd.f32 %v235, %v242
      %248 = vrot.lane.b32.xlu0 %v216, 17
      %v249 = vpop.permute.xlu0 %248
      %250 = vrot.lane.b32.xlu0 %v218, 17
      %v251 = vpop.permute.xlu0 %250
      %252 = vrot.lane.b32.xlu0 %v217, 17
      %v253 = vpop.permute.xlu0 %252
      %254 = vrot.lane.b32.xlu0 %v219, 17
      %v255 = vpop.permute.xlu0 %254
      %v256 = vlaneseq
      %v257 = vand.u32 %v256, 127
      %vm258 = vcmp.lt.s32.totalorder %v257, 17
      %v259 = vsel %vm258, %v249, %v253
      %v260 = vsel %vm258, %v251, %v255
      %v261 = vsel %vm258, %v253, %v249
      %v262 = vsel %vm258, %v255, %v251
      %v264 = vperm.slane %v201, 0
      %v265 = vperm.slane %v201, 1
      %v268 = vmul.f32 %v261, %v264
      %v269 = vmul.f32 %v259, %v265
      %v270 = vmul.f32 %v262, %v264
      %v271 = vmul.f32 %v260, %v265
      %272 = vset.pattern.permute.xlu0 0
      %273 = vperm.xlu0 %272, %v220
      %v274 = vpop.permute.xlu0 %273
      %276 = vset.pattern.permute.xlu0 0
      %277 = vperm.xlu0 %276, %v221
      %v278 = vpop.permute.xlu0 %277
      %v280 = vmul.f32 %v268, %v274
      %v281 = vmul.f32 %v269, %v274
      %v282 = vmul.f32 %v270, %v278
      %v283 = vmul.f32 %v271, %v278
      %v284 = vadd.f32 %v244, %v280
      %v285 = vadd.f32 %v245, %v281
      %v286 = vadd.f32 %v246, %v282
      %v287 = vadd.f32 %v247, %v283
      %288 = vrot.lane.b32.xlu0 %v216, 16
      %v289 = vpop.permute.xlu0 %288
      %290 = vrot.lane.b32.xlu0 %v218, 16
      %v291 = vpop.permute.xlu0 %290
      %292 = vrot.lane.b32.xlu0 %v217, 16
      %v293 = vpop.permute.xlu0 %292
      %294 = vrot.lane.b32.xlu0 %v219, 16
      %v295 = vpop.permute.xlu0 %294
      %vm296 = vcmp.lt.s32.totalorder %v257, 16
      %v297 = vsel %vm296, %v289, %v293
      %v298 = vsel %vm296, %v291, %v295
      %v299 = vsel %vm296, %v293, %v289
      %v300 = vsel %vm296, %v295, %v291
      %v302 = vperm.slane %v203, 0
      %v303 = vperm.slane %v203, 1
      %v306 = vmul.f32 %v299, %v302
      %v307 = vmul.f32 %v297, %v303
      %v308 = vmul.f32 %v300, %v302
      %v309 = vmul.f32 %v298, %v303
      %310 = vset.pattern.permute.xlu0 1
      %311 = vperm.xlu0 %310, %v220
      %v312 = vpop.permute.xlu0 %311
      %314 = vset.pattern.permute.xlu0 1
      %315 = vperm.xlu0 %314, %v221
      %v316 = vpop.permute.xlu0 %315
      %v318 = vmul.f32 %v306, %v312
      %v319 = vmul.f32 %v307, %v312
      %v320 = vmul.f32 %v308, %v316
      %v321 = vmul.f32 %v309, %v316
      %v322 = vadd.f32 %v284, %v318
      %v323 = vadd.f32 %v285, %v319
      %v324 = vadd.f32 %v286, %v320
      %v325 = vadd.f32 %v287, %v321
      %326 = vrot.lane.b32.xlu0 %v216, 15
      %v327 = vpop.permute.xlu0 %326
      %328 = vrot.lane.b32.xlu0 %v218, 15
      %v329 = vpop.permute.xlu0 %328
      %330 = vrot.lane.b32.xlu0 %v217, 15
      %v331 = vpop.permute.xlu0 %330
      %332 = vrot.lane.b32.xlu0 %v219, 15
      %v333 = vpop.permute.xlu0 %332
      %vm334 = vcmp.lt.s32.totalorder %v257, 15
      %v335 = vsel %vm334, %v327, %v331
      %v336 = vsel %vm334, %v329, %v333
      %v337 = vsel %vm334, %v331, %v327
      %v338 = vsel %vm334, %v333, %v329
      %v340 = vperm.slane %v205, 0
      %v341 = vperm.slane %v205, 1
      %v344 = vmul.f32 %v337, %v340
      %v345 = vmul.f32 %v335, %v341
      %v346 = vmul.f32 %v338, %v340
      %v347 = vmul.f32 %v336, %v341
      %348 = vset.pattern.permute.xlu0 2
      %349 = vperm.xlu0 %348, %v220
      %v350 = vpop.permute.xlu0 %349
      %352 = vset.pattern.permute.xlu0 2
      %353 = vperm.xlu0 %352, %v221
      %v354 = vpop.permute.xlu0 %353
      %v356 = vmul.f32 %v344, %v350
      %v357 = vmul.f32 %v345, %v350
      %v358 = vmul.f32 %v346, %v354
      %v359 = vmul.f32 %v347, %v354
      %v360 = vadd.f32 %v322, %v356
      %v361 = vadd.f32 %v323, %v357
      %v362 = vadd.f32 %v324, %v358
      %v363 = vadd.f32 %v325, %v359
      %364 = vrot.lane.b32.xlu0 %v216, 1
      %v365 = vpop.permute.xlu0 %364
      %366 = vrot.lane.b32.xlu0 %v218, 1
      %v367 = vpop.permute.xlu0 %366
      %368 = vrot.lane.b32.xlu0 %v217, 1
      %v369 = vpop.permute.xlu0 %368
      %370 = vrot.lane.b32.xlu0 %v219, 1
      %v371 = vpop.permute.xlu0 %370
      %vm372 = vcmp.lt.s32.totalorder %v257, 1
      %v373 = vsel %vm372, %v365, %v369
      %v374 = vsel %vm372, %v367, %v371
      %v375 = vsel %vm372, %v369, %v365
      %v376 = vsel %vm372, %v371, %v367
      %v378 = vperm.slane %v207, 0
      %v379 = vperm.slane %v207, 1
      %v382 = vmul.f32 %v375, %v378
      %v383 = vmul.f32 %v373, %v379
      %v384 = vmul.f32 %v376, %v378
      %v385 = vmul.f32 %v374, %v379
      %386 = vset.pattern.permute.xlu0 3
      %387 = vperm.xlu0 %386, %v220
      %v388 = vpop.permute.xlu0 %387
      %390 = vset.pattern.permute.xlu0 3
      %391 = vperm.xlu0 %390, %v221
      %v392 = vpop.permute.xlu0 %391
      %v394 = vmul.f32 %v382, %v388
      %v395 = vmul.f32 %v383, %v388
      %v396 = vmul.f32 %v384, %v392
      %v397 = vmul.f32 %v385, %v392
      %v398 = vadd.f32 %v360, %v394
      %v399 = vadd.f32 %v361, %v395
      %v400 = vadd.f32 %v362, %v396
      %v401 = vadd.f32 %v363, %v397
      %402 = vrot.lane.b32.xlu0 %v216, 127
      %v403 = vpop.permute.xlu0 %402
      %404 = vrot.lane.b32.xlu0 %v218, 127
      %v405 = vpop.permute.xlu0 %404
      %406 = vrot.lane.b32.xlu0 %v217, 127
      %v407 = vpop.permute.xlu0 %406
      %408 = vrot.lane.b32.xlu0 %v219, 127
      %v409 = vpop.permute.xlu0 %408
      %vm410 = vcmp.lt.s32.totalorder %v257, 127
      %v411 = vsel %vm410, %v403, %v407
      %v412 = vsel %vm410, %v405, %v409
      %v413 = vsel %vm410, %v407, %v403
      %v414 = vsel %vm410, %v409, %v405
      %v416 = vperm.slane %v209, 0
      %v417 = vperm.slane %v209, 1
      %v420 = vmul.f32 %v411, %v416
      %v421 = vmul.f32 %v413, %v417
      %v422 = vmul.f32 %v412, %v416
      %v423 = vmul.f32 %v414, %v417
      %424 = vset.pattern.permute.xlu0 5
      %425 = vperm.xlu0 %424, %v220
      %v426 = vpop.permute.xlu0 %425
      %428 = vset.pattern.permute.xlu0 5
      %429 = vperm.xlu0 %428, %v221
      %v430 = vpop.permute.xlu0 %429
      %v432 = vmul.f32 %v420, %v426
      %v433 = vmul.f32 %v421, %v426
      %v434 = vmul.f32 %v422, %v430
      %v435 = vmul.f32 %v423, %v430
      %v436 = vadd.f32 %v398, %v432
      %v437 = vadd.f32 %v399, %v433
      %v438 = vadd.f32 %v400, %v434
      %v439 = vadd.f32 %v401, %v435
      %440 = vrot.lane.b32.xlu0 %v216, 113
      %v441 = vpop.permute.xlu0 %440
      %442 = vrot.lane.b32.xlu0 %v218, 113
      %v443 = vpop.permute.xlu0 %442
      %444 = vrot.lane.b32.xlu0 %v217, 113
      %v445 = vpop.permute.xlu0 %444
      %446 = vrot.lane.b32.xlu0 %v219, 113
      %v447 = vpop.permute.xlu0 %446
      %vm448 = vcmp.lt.s32.totalorder %v257, 113
      %v449 = vsel %vm448, %v441, %v445
      %v450 = vsel %vm448, %v443, %v447
      %v451 = vsel %vm448, %v445, %v441
      %v452 = vsel %vm448, %v447, %v443
      %v454 = vperm.slane %v211, 0
      %v455 = vperm.slane %v211, 1
      %v458 = vmul.f32 %v449, %v454
      %v459 = vmul.f32 %v451, %v455
      %v460 = vmul.f32 %v450, %v454
      %v461 = vmul.f32 %v452, %v455
      %462 = vset.pattern.permute.xlu0 6
      %463 = vperm.xlu0 %462, %v220
      %v464 = vpop.permute.xlu0 %463
      %466 = vset.pattern.permute.xlu0 6
      %467 = vperm.xlu0 %466, %v221
      %v468 = vpop.permute.xlu0 %467
      %v470 = vmul.f32 %v458, %v464
      %v471 = vmul.f32 %v459, %v464
      %v472 = vmul.f32 %v460, %v468
      %v473 = vmul.f32 %v461, %v468
      %v474 = vadd.f32 %v436, %v470
      %v475 = vadd.f32 %v437, %v471
      %v476 = vadd.f32 %v438, %v472
      %v477 = vadd.f32 %v439, %v473
      %478 = vrot.lane.b32.xlu0 %v216, 112
      %v479 = vpop.permute.xlu0 %478
      %480 = vrot.lane.b32.xlu0 %v218, 112
      %v481 = vpop.permute.xlu0 %480
      %482 = vrot.lane.b32.xlu0 %v217, 112
      %v483 = vpop.permute.xlu0 %482
      %484 = vrot.lane.b32.xlu0 %v219, 112
      %v485 = vpop.permute.xlu0 %484
      %vm486 = vcmp.lt.s32.totalorder %v257, 112
      %v487 = vsel %vm486, %v479, %v483
      %v488 = vsel %vm486, %v481, %v485
      %v489 = vsel %vm486, %v483, %v479
      %v490 = vsel %vm486, %v485, %v481
      %v492 = vperm.slane %v213, 0
      %v493 = vperm.slane %v213, 1
      %v496 = vmul.f32 %v487, %v492
      %v497 = vmul.f32 %v489, %v493
      %v498 = vmul.f32 %v488, %v492
      %v499 = vmul.f32 %v490, %v493
      %500 = vset.pattern.permute.xlu0 7
      %501 = vperm.xlu0 %500, %v220
      %v502 = vpop.permute.xlu0 %501
      %504 = vset.pattern.permute.xlu0 7
      %505 = vperm.xlu0 %504, %v221
      %v506 = vpop.permute.xlu0 %505
      %v508 = vmul.f32 %v496, %v502
      %v509 = vmul.f32 %v497, %v502
      %v510 = vmul.f32 %v498, %v506
      %v511 = vmul.f32 %v499, %v506
      %v512 = vadd.f32 %v474, %v508
      %v513 = vadd.f32 %v475, %v509
      %v514 = vadd.f32 %v476, %v510
      %v515 = vadd.f32 %v477, %v511
      %516 = vrot.lane.b32.xlu0 %v216, 111
      %v517 = vpop.permute.xlu0 %516
      %518 = vrot.lane.b32.xlu0 %v218, 111
      %v519 = vpop.permute.xlu0 %518
      %520 = vrot.lane.b32.xlu0 %v217, 111
      %v521 = vpop.permute.xlu0 %520
      %522 = vrot.lane.b32.xlu0 %v219, 111
      %v523 = vpop.permute.xlu0 %522
      %vm524 = vcmp.lt.s32.totalorder %v257, 111
      %v525 = vsel %vm524, %v517, %v521
      %v526 = vsel %vm524, %v519, %v523
      %v527 = vsel %vm524, %v521, %v517
      %v528 = vsel %vm524, %v523, %v519
      %v530 = vperm.slane %v215, 0
      %v531 = vperm.slane %v215, 1
      %v534 = vmul.f32 %v525, %v530
      %v535 = vmul.f32 %v527, %v531
      %v536 = vmul.f32 %v526, %v530
      %v537 = vmul.f32 %v528, %v531
      %538 = vset.pattern.permute.xlu0 8
      %539 = vperm.xlu0 %538, %v220
      %v540 = vpop.permute.xlu0 %539
      %542 = vset.pattern.permute.xlu0 8
      %543 = vperm.xlu0 %542, %v221
      %v544 = vpop.permute.xlu0 %543
      %v546 = vmul.f32 %v534, %v540
      %v547 = vmul.f32 %v535, %v540
      %v548 = vmul.f32 %v536, %v544
      %v549 = vmul.f32 %v537, %v544
      %v550 = vadd.f32 %v512, %v546
      %v551 = vadd.f32 %v513, %v547
      %v552 = vadd.f32 %v514, %v548
      %v553 = vadd.f32 %v515, %v549
      %554 = vst [vmem:[%s199] sm:$0xff] %v550
      %555 = vst [vmem:[%s199 + $0x8] sm:$0xff] %v551
      %556 = vst [vmem:[%s199 + $0x10] sm:$0xff] %v552
      %557 = vst [vmem:[%s199 + $0x18] sm:$0xff] %v553
      %v558 = vld [vmem:[%s186 + $0x20] sm:$0xff]
      %v559 = vld [vmem:[%s186 + $0x28] sm:$0xff]
      %v560 = vld [vmem:[%s186 + $0x30] sm:$0xff]
      %v561 = vld [vmem:[%s186 + $0x38] sm:$0xff]
      %v562 = vld [vmem:[%s192 + $0x10] sm:$0xff]
      %v563 = vld [vmem:[%s192 + $0x18] sm:$0xff]
      %565 = vset.pattern.permute.xlu0 4
      %566 = vperm.xlu0 %565, %v562
      %v567 = vpop.permute.xlu0 %566
      %570 = vset.pattern.permute.xlu0 4
      %571 = vperm.xlu0 %570, %v563
      %v572 = vpop.permute.xlu0 %571
      %v574 = vmul.f32 %v558, %v567
      %v575 = vmul.f32 %v559, %v567
      %v576 = vmul.f32 %v560, %v572
      %v577 = vmul.f32 %v561, %v572
      %578 = vset.pattern.permute.xlu0 9
      %579 = vperm.xlu0 %578, %v562
      %v580 = vpop.permute.xlu0 %579
      %582 = vset.pattern.permute.xlu0 9
      %583 = vperm.xlu0 %582, %v563
      %v584 = vpop.permute.xlu0 %583
      %v586 = vadd.f32 %v574, %v580
      %v587 = vadd.f32 %v575, %v580
      %v588 = vadd.f32 %v576, %v584
      %v589 = vadd.f32 %v577, %v584
      %590 = vrot.lane.b32.xlu0 %v558, 17
      %v591 = vpop.permute.xlu0 %590
      %592 = vrot.lane.b32.xlu0 %v560, 17
      %v593 = vpop.permute.xlu0 %592
      %594 = vrot.lane.b32.xlu0 %v559, 17
      %v595 = vpop.permute.xlu0 %594
      %596 = vrot.lane.b32.xlu0 %v561, 17
      %v597 = vpop.permute.xlu0 %596
      %v598 = vsel %vm258, %v591, %v595
      %v599 = vsel %vm258, %v593, %v597
      %v600 = vsel %vm258, %v595, %v591
      %v601 = vsel %vm258, %v597, %v593
      %v602 = vmul.f32 %v600, %v264
      %v603 = vmul.f32 %v598, %v265
      %v604 = vmul.f32 %v601, %v264
      %v605 = vmul.f32 %v599, %v265
      %606 = vset.pattern.permute.xlu0 0
      %607 = vperm.xlu0 %606, %v562
      %v608 = vpop.permute.xlu0 %607
      %610 = vset.pattern.permute.xlu0 0
      %611 = vperm.xlu0 %610, %v563
      %v612 = vpop.permute.xlu0 %611
      %v614 = vmul.f32 %v602, %v608
      %v615 = vmul.f32 %v603, %v608
      %v616 = vmul.f32 %v604, %v612
      %v617 = vmul.f32 %v605, %v612
      %v618 = vadd.f32 %v586, %v614
      %v619 = vadd.f32 %v587, %v615
      %v620 = vadd.f32 %v588, %v616
      %v621 = vadd.f32 %v589, %v617
      %622 = vrot.lane.b32.xlu0 %v558, 16
      %v623 = vpop.permute.xlu0 %622
      %624 = vrot.lane.b32.xlu0 %v560, 16
      %v625 = vpop.permute.xlu0 %624
      %626 = vrot.lane.b32.xlu0 %v559, 16
      %v627 = vpop.permute.xlu0 %626
      %628 = vrot.lane.b32.xlu0 %v561, 16
      %v629 = vpop.permute.xlu0 %628
      %v630 = vsel %vm296, %v623, %v627
      %v631 = vsel %vm296, %v625, %v629
      %v632 = vsel %vm296, %v627, %v623
      %v633 = vsel %vm296, %v629, %v625
      %v634 = vmul.f32 %v632, %v302
      %v635 = vmul.f32 %v630, %v303
      %v636 = vmul.f32 %v633, %v302
      %v637 = vmul.f32 %v631, %v303
      %638 = vset.pattern.permute.xlu0 1
      %639 = vperm.xlu0 %638, %v562
      %v640 = vpop.permute.xlu0 %639
      %642 = vset.pattern.permute.xlu0 1
      %643 = vperm.xlu0 %642, %v563
      %v644 = vpop.permute.xlu0 %643
      %v646 = vmul.f32 %v634, %v640
      %v647 = vmul.f32 %v635, %v640
      %v648 = vmul.f32 %v636, %v644
      %v649 = vmul.f32 %v637, %v644
      %v650 = vadd.f32 %v618, %v646
      %v651 = vadd.f32 %v619, %v647
      %v652 = vadd.f32 %v620, %v648
      %v653 = vadd.f32 %v621, %v649
      %654 = vrot.lane.b32.xlu0 %v558, 15
      %v655 = vpop.permute.xlu0 %654
      %656 = vrot.lane.b32.xlu0 %v560, 15
      %v657 = vpop.permute.xlu0 %656
      %658 = vrot.lane.b32.xlu0 %v559, 15
      %v659 = vpop.permute.xlu0 %658
      %660 = vrot.lane.b32.xlu0 %v561, 15
      %v661 = vpop.permute.xlu0 %660
      %v662 = vsel %vm334, %v655, %v659
      %v663 = vsel %vm334, %v657, %v661
      %v664 = vsel %vm334, %v659, %v655
      %v665 = vsel %vm334, %v661, %v657
      %v666 = vmul.f32 %v664, %v340
      %v667 = vmul.f32 %v662, %v341
      %v668 = vmul.f32 %v665, %v340
      %v669 = vmul.f32 %v663, %v341
      %670 = vset.pattern.permute.xlu0 2
      %671 = vperm.xlu0 %670, %v562
      %v672 = vpop.permute.xlu0 %671
      %674 = vset.pattern.permute.xlu0 2
      %675 = vperm.xlu0 %674, %v563
      %v676 = vpop.permute.xlu0 %675
      %v678 = vmul.f32 %v666, %v672
      %v679 = vmul.f32 %v667, %v672
      %v680 = vmul.f32 %v668, %v676
      %v681 = vmul.f32 %v669, %v676
      %v682 = vadd.f32 %v650, %v678
      %v683 = vadd.f32 %v651, %v679
      %v684 = vadd.f32 %v652, %v680
      %v685 = vadd.f32 %v653, %v681
      %686 = vrot.lane.b32.xlu0 %v558, 1
      %v687 = vpop.permute.xlu0 %686
      %688 = vrot.lane.b32.xlu0 %v560, 1
      %v689 = vpop.permute.xlu0 %688
      %690 = vrot.lane.b32.xlu0 %v559, 1
      %v691 = vpop.permute.xlu0 %690
      %692 = vrot.lane.b32.xlu0 %v561, 1
      %v693 = vpop.permute.xlu0 %692
      %v694 = vsel %vm372, %v687, %v691
      %v695 = vsel %vm372, %v689, %v693
      %v696 = vsel %vm372, %v691, %v687
      %v697 = vsel %vm372, %v693, %v689
      %v698 = vmul.f32 %v696, %v378
      %v699 = vmul.f32 %v694, %v379
      %v700 = vmul.f32 %v697, %v378
      %v701 = vmul.f32 %v695, %v379
      %702 = vset.pattern.permute.xlu0 3
      %703 = vperm.xlu0 %702, %v562
      %v704 = vpop.permute.xlu0 %703
      %706 = vset.pattern.permute.xlu0 3
      %707 = vperm.xlu0 %706, %v563
      %v708 = vpop.permute.xlu0 %707
      %v710 = vmul.f32 %v698, %v704
      %v711 = vmul.f32 %v699, %v704
      %v712 = vmul.f32 %v700, %v708
      %v713 = vmul.f32 %v701, %v708
      %v714 = vadd.f32 %v682, %v710
      %v715 = vadd.f32 %v683, %v711
      %v716 = vadd.f32 %v684, %v712
      %v717 = vadd.f32 %v685, %v713
      %718 = vrot.lane.b32.xlu0 %v558, 127
      %v719 = vpop.permute.xlu0 %718
      %720 = vrot.lane.b32.xlu0 %v560, 127
      %v721 = vpop.permute.xlu0 %720
      %722 = vrot.lane.b32.xlu0 %v559, 127
      %v723 = vpop.permute.xlu0 %722
      %724 = vrot.lane.b32.xlu0 %v561, 127
      %v725 = vpop.permute.xlu0 %724
      %v726 = vsel %vm410, %v719, %v723
      %v727 = vsel %vm410, %v721, %v725
      %v728 = vsel %vm410, %v723, %v719
      %v729 = vsel %vm410, %v725, %v721
      %v730 = vmul.f32 %v726, %v416
      %v731 = vmul.f32 %v728, %v417
      %v732 = vmul.f32 %v727, %v416
      %v733 = vmul.f32 %v729, %v417
      %734 = vset.pattern.permute.xlu0 5
      %735 = vperm.xlu0 %734, %v562
      %v736 = vpop.permute.xlu0 %735
      %738 = vset.pattern.permute.xlu0 5
      %739 = vperm.xlu0 %738, %v563
      %v740 = vpop.permute.xlu0 %739
      %v742 = vmul.f32 %v730, %v736
      %v743 = vmul.f32 %v731, %v736
      %v744 = vmul.f32 %v732, %v740
      %v745 = vmul.f32 %v733, %v740
      %v746 = vadd.f32 %v714, %v742
      %v747 = vadd.f32 %v715, %v743
      %v748 = vadd.f32 %v716, %v744
      %v749 = vadd.f32 %v717, %v745
      %750 = vrot.lane.b32.xlu0 %v558, 113
      %v751 = vpop.permute.xlu0 %750
      %752 = vrot.lane.b32.xlu0 %v560, 113
      %v753 = vpop.permute.xlu0 %752
      %754 = vrot.lane.b32.xlu0 %v559, 113
      %v755 = vpop.permute.xlu0 %754
      %756 = vrot.lane.b32.xlu0 %v561, 113
      %v757 = vpop.permute.xlu0 %756
      %v758 = vsel %vm448, %v751, %v755
      %v759 = vsel %vm448, %v753, %v757
      %v760 = vsel %vm448, %v755, %v751
      %v761 = vsel %vm448, %v757, %v753
      %v762 = vmul.f32 %v758, %v454
      %v763 = vmul.f32 %v760, %v455
      %v764 = vmul.f32 %v759, %v454
      %v765 = vmul.f32 %v761, %v455
      %766 = vset.pattern.permute.xlu0 6
      %767 = vperm.xlu0 %766, %v562
      %v768 = vpop.permute.xlu0 %767
      %770 = vset.pattern.permute.xlu0 6
      %771 = vperm.xlu0 %770, %v563
      %v772 = vpop.permute.xlu0 %771
      %v774 = vmul.f32 %v762, %v768
      %v775 = vmul.f32 %v763, %v768
      %v776 = vmul.f32 %v764, %v772
      %v777 = vmul.f32 %v765, %v772
      %v778 = vadd.f32 %v746, %v774
      %v779 = vadd.f32 %v747, %v775
      %v780 = vadd.f32 %v748, %v776
      %v781 = vadd.f32 %v749, %v777
      %782 = vrot.lane.b32.xlu0 %v558, 112
      %v783 = vpop.permute.xlu0 %782
      %784 = vrot.lane.b32.xlu0 %v560, 112
      %v785 = vpop.permute.xlu0 %784
      %786 = vrot.lane.b32.xlu0 %v559, 112
      %v787 = vpop.permute.xlu0 %786
      %788 = vrot.lane.b32.xlu0 %v561, 112
      %v789 = vpop.permute.xlu0 %788
      %v790 = vsel %vm486, %v783, %v787
      %v791 = vsel %vm486, %v785, %v789
      %v792 = vsel %vm486, %v787, %v783
      %v793 = vsel %vm486, %v789, %v785
      %v794 = vmul.f32 %v790, %v492
      %v795 = vmul.f32 %v792, %v493
      %v796 = vmul.f32 %v791, %v492
      %v797 = vmul.f32 %v793, %v493
      %798 = vset.pattern.permute.xlu0 7
      %799 = vperm.xlu0 %798, %v562
      %v800 = vpop.permute.xlu0 %799
      %802 = vset.pattern.permute.xlu0 7
      %803 = vperm.xlu0 %802, %v563
      %v804 = vpop.permute.xlu0 %803
      %v806 = vmul.f32 %v794, %v800
      %v807 = vmul.f32 %v795, %v800
      %v808 = vmul.f32 %v796, %v804
      %v809 = vmul.f32 %v797, %v804
      %v810 = vadd.f32 %v778, %v806
      %v811 = vadd.f32 %v779, %v807
      %v812 = vadd.f32 %v780, %v808
      %v813 = vadd.f32 %v781, %v809
      %814 = vrot.lane.b32.xlu0 %v558, 111
      %v815 = vpop.permute.xlu0 %814
      %816 = vrot.lane.b32.xlu0 %v560, 111
      %v817 = vpop.permute.xlu0 %816
      %818 = vrot.lane.b32.xlu0 %v559, 111
      %v819 = vpop.permute.xlu0 %818
      %820 = vrot.lane.b32.xlu0 %v561, 111
      %v821 = vpop.permute.xlu0 %820
      %v822 = vsel %vm524, %v815, %v819
      %v823 = vsel %vm524, %v817, %v821
      %v824 = vsel %vm524, %v819, %v815
      %v825 = vsel %vm524, %v821, %v817
      %v826 = vmul.f32 %v822, %v530
      %v827 = vmul.f32 %v824, %v531
      %v828 = vmul.f32 %v823, %v530
      %v829 = vmul.f32 %v825, %v531
      %830 = vset.pattern.permute.xlu0 8
      %831 = vperm.xlu0 %830, %v562
      %v832 = vpop.permute.xlu0 %831
      %834 = vset.pattern.permute.xlu0 8
      %835 = vperm.xlu0 %834, %v563
      %v836 = vpop.permute.xlu0 %835
      %v838 = vmul.f32 %v826, %v832
      %v839 = vmul.f32 %v827, %v832
      %v840 = vmul.f32 %v828, %v836
      %v841 = vmul.f32 %v829, %v836
      %v842 = vadd.f32 %v810, %v838
      %v843 = vadd.f32 %v811, %v839
      %v844 = vadd.f32 %v812, %v840
      %v845 = vadd.f32 %v813, %v841
      %846 = vst [vmem:[%s199 + $0x20] sm:$0xff] %v842
      %847 = vst [vmem:[%s199 + $0x28] sm:$0xff] %v843
      %848 = vst [vmem:[%s199 + $0x30] sm:$0xff] %v844
      %849 = vst [vmem:[%s199 + $0x38] sm:$0xff] %v845
      %v850 = vld [vmem:[%s186 + $0x40] sm:$0xff]
      %v851 = vld [vmem:[%s186 + $0x48] sm:$0xff]
      %v852 = vld [vmem:[%s186 + $0x50] sm:$0xff]
      %v853 = vld [vmem:[%s186 + $0x58] sm:$0xff]
      %v854 = vld [vmem:[%s192 + $0x20] sm:$0xff]
      %v855 = vld [vmem:[%s192 + $0x28] sm:$0xff]
      %857 = vset.pattern.permute.xlu0 4
      %858 = vperm.xlu0 %857, %v854
      %v859 = vpop.permute.xlu0 %858
      %862 = vset.pattern.permute.xlu0 4
      %863 = vperm.xlu0 %862, %v855
      %v864 = vpop.permute.xlu0 %863
      %v866 = vmul.f32 %v850, %v859
      %v867 = vmul.f32 %v851, %v859
      %v868 = vmul.f32 %v852, %v864
      %v869 = vmul.f32 %v853, %v864
      %870 = vset.pattern.permute.xlu0 9
      %871 = vperm.xlu0 %870, %v854
      %v872 = vpop.permute.xlu0 %871
      %874 = vset.pattern.permute.xlu0 9
      %875 = vperm.xlu0 %874, %v855
      %v876 = vpop.permute.xlu0 %875
      %v878 = vadd.f32 %v866, %v872
      %v879 = vadd.f32 %v867, %v872
      %v880 = vadd.f32 %v868, %v876
      %v881 = vadd.f32 %v869, %v876
      %882 = vrot.lane.b32.xlu0 %v850, 17
      %v883 = vpop.permute.xlu0 %882
      %884 = vrot.lane.b32.xlu0 %v852, 17
      %v885 = vpop.permute.xlu0 %884
      %886 = vrot.lane.b32.xlu0 %v851, 17
      %v887 = vpop.permute.xlu0 %886
      %888 = vrot.lane.b32.xlu0 %v853, 17
      %v889 = vpop.permute.xlu0 %888
      %v890 = vsel %vm258, %v883, %v887
      %v891 = vsel %vm258, %v885, %v889
      %v892 = vsel %vm258, %v887, %v883
      %v893 = vsel %vm258, %v889, %v885
      %v894 = vmul.f32 %v892, %v264
      %v895 = vmul.f32 %v890, %v265
      %v896 = vmul.f32 %v893, %v264
      %v897 = vmul.f32 %v891, %v265
      %898 = vset.pattern.permute.xlu0 0
      %899 = vperm.xlu0 %898, %v854
      %v900 = vpop.permute.xlu0 %899
      %902 = vset.pattern.permute.xlu0 0
      %903 = vperm.xlu0 %902, %v855
      %v904 = vpop.permute.xlu0 %903
      %v906 = vmul.f32 %v894, %v900
      %v907 = vmul.f32 %v895, %v900
      %v908 = vmul.f32 %v896, %v904
      %v909 = vmul.f32 %v897, %v904
      %v910 = vadd.f32 %v878, %v906
      %v911 = vadd.f32 %v879, %v907
      %v912 = vadd.f32 %v880, %v908
      %v913 = vadd.f32 %v881, %v909
      %914 = vrot.lane.b32.xlu0 %v850, 16
      %v915 = vpop.permute.xlu0 %914
      %916 = vrot.lane.b32.xlu0 %v852, 16
      %v917 = vpop.permute.xlu0 %916
      %918 = vrot.lane.b32.xlu0 %v851, 16
      %v919 = vpop.permute.xlu0 %918
      %920 = vrot.lane.b32.xlu0 %v853, 16
      %v921 = vpop.permute.xlu0 %920
      %v922 = vsel %vm296, %v915, %v919
      %v923 = vsel %vm296, %v917, %v921
      %v924 = vsel %vm296, %v919, %v915
      %v925 = vsel %vm296, %v921, %v917
      %v926 = vmul.f32 %v924, %v302
      %v927 = vmul.f32 %v922, %v303
      %v928 = vmul.f32 %v925, %v302
      %v929 = vmul.f32 %v923, %v303
      %930 = vset.pattern.permute.xlu0 1
      %931 = vperm.xlu0 %930, %v854
      %v932 = vpop.permute.xlu0 %931
      %934 = vset.pattern.permute.xlu0 1
      %935 = vperm.xlu0 %934, %v855
      %v936 = vpop.permute.xlu0 %935
      %v938 = vmul.f32 %v926, %v932
      %v939 = vmul.f32 %v927, %v932
      %v940 = vmul.f32 %v928, %v936
      %v941 = vmul.f32 %v929, %v936
      %v942 = vadd.f32 %v910, %v938
      %v943 = vadd.f32 %v911, %v939
      %v944 = vadd.f32 %v912, %v940
      %v945 = vadd.f32 %v913, %v941
      %946 = vrot.lane.b32.xlu0 %v850, 15
      %v947 = vpop.permute.xlu0 %946
      %948 = vrot.lane.b32.xlu0 %v852, 15
      %v949 = vpop.permute.xlu0 %948
      %950 = vrot.lane.b32.xlu0 %v851, 15
      %v951 = vpop.permute.xlu0 %950
      %952 = vrot.lane.b32.xlu0 %v853, 15
      %v953 = vpop.permute.xlu0 %952
      %v954 = vsel %vm334, %v947, %v951
      %v955 = vsel %vm334, %v949, %v953
      %v956 = vsel %vm334, %v951, %v947
      %v957 = vsel %vm334, %v953, %v949
      %v958 = vmul.f32 %v956, %v340
      %v959 = vmul.f32 %v954, %v341
      %v960 = vmul.f32 %v957, %v340
      %v961 = vmul.f32 %v955, %v341
      %962 = vset.pattern.permute.xlu0 2
      %963 = vperm.xlu0 %962, %v854
      %v964 = vpop.permute.xlu0 %963
      %966 = vset.pattern.permute.xlu0 2
      %967 = vperm.xlu0 %966, %v855
      %v968 = vpop.permute.xlu0 %967
      %v970 = vmul.f32 %v958, %v964
      %v971 = vmul.f32 %v959, %v964
      %v972 = vmul.f32 %v960, %v968
      %v973 = vmul.f32 %v961, %v968
      %v974 = vadd.f32 %v942, %v970
      %v975 = vadd.f32 %v943, %v971
      %v976 = vadd.f32 %v944, %v972
      %v977 = vadd.f32 %v945, %v973
      %978 = vrot.lane.b32.xlu0 %v850, 1
      %v979 = vpop.permute.xlu0 %978
      %980 = vrot.lane.b32.xlu0 %v852, 1
      %v981 = vpop.permute.xlu0 %980
      %982 = vrot.lane.b32.xlu0 %v851, 1
      %v983 = vpop.permute.xlu0 %982
      %984 = vrot.lane.b32.xlu0 %v853, 1
      %v985 = vpop.permute.xlu0 %984
      %v986 = vsel %vm372, %v979, %v983
      %v987 = vsel %vm372, %v981, %v985
      %v988 = vsel %vm372, %v983, %v979
      %v989 = vsel %vm372, %v985, %v981
      %v990 = vmul.f32 %v988, %v378
      %v991 = vmul.f32 %v986, %v379
      %v992 = vmul.f32 %v989, %v378
      %v993 = vmul.f32 %v987, %v379
      %994 = vset.pattern.permute.xlu0 3
      %995 = vperm.xlu0 %994, %v854
      %v996 = vpop.permute.xlu0 %995
      %998 = vset.pattern.permute.xlu0 3
      %999 = vperm.xlu0 %998, %v855
      %v1000 = vpop.permute.xlu0 %999
      %v1002 = vmul.f32 %v990, %v996
      %v1003 = vmul.f32 %v991, %v996
      %v1004 = vmul.f32 %v992, %v1000
      %v1005 = vmul.f32 %v993, %v1000
      %v1006 = vadd.f32 %v974, %v1002
      %v1007 = vadd.f32 %v975, %v1003
      %v1008 = vadd.f32 %v976, %v1004
      %v1009 = vadd.f32 %v977, %v1005
      %1010 = vrot.lane.b32.xlu0 %v850, 127
      %v1011 = vpop.permute.xlu0 %1010
      %1012 = vrot.lane.b32.xlu0 %v852, 127
      %v1013 = vpop.permute.xlu0 %1012
      %1014 = vrot.lane.b32.xlu0 %v851, 127
      %v1015 = vpop.permute.xlu0 %1014
      %1016 = vrot.lane.b32.xlu0 %v853, 127
      %v1017 = vpop.permute.xlu0 %1016
      %v1018 = vsel %vm410, %v1011, %v1015
      %v1019 = vsel %vm410, %v1013, %v1017
      %v1020 = vsel %vm410, %v1015, %v1011
      %v1021 = vsel %vm410, %v1017, %v1013
      %v1022 = vmul.f32 %v1018, %v416
      %v1023 = vmul.f32 %v1020, %v417
      %v1024 = vmul.f32 %v1019, %v416
      %v1025 = vmul.f32 %v1021, %v417
      %1026 = vset.pattern.permute.xlu0 5
      %1027 = vperm.xlu0 %1026, %v854
      %v1028 = vpop.permute.xlu0 %1027
      %1030 = vset.pattern.permute.xlu0 5
      %1031 = vperm.xlu0 %1030, %v855
      %v1032 = vpop.permute.xlu0 %1031
      %v1034 = vmul.f32 %v1022, %v1028
      %v1035 = vmul.f32 %v1023, %v1028
      %v1036 = vmul.f32 %v1024, %v1032
      %v1037 = vmul.f32 %v1025, %v1032
      %v1038 = vadd.f32 %v1006, %v1034
      %v1039 = vadd.f32 %v1007, %v1035
      %v1040 = vadd.f32 %v1008, %v1036
      %v1041 = vadd.f32 %v1009, %v1037
      %1042 = vrot.lane.b32.xlu0 %v850, 113
      %v1043 = vpop.permute.xlu0 %1042
      %1044 = vrot.lane.b32.xlu0 %v852, 113
      %v1045 = vpop.permute.xlu0 %1044
      %1046 = vrot.lane.b32.xlu0 %v851, 113
      %v1047 = vpop.permute.xlu0 %1046
      %1048 = vrot.lane.b32.xlu0 %v853, 113
      %v1049 = vpop.permute.xlu0 %1048
      %v1050 = vsel %vm448, %v1043, %v1047
      %v1051 = vsel %vm448, %v1045, %v1049
      %v1052 = vsel %vm448, %v1047, %v1043
      %v1053 = vsel %vm448, %v1049, %v1045
      %v1054 = vmul.f32 %v1050, %v454
      %v1055 = vmul.f32 %v1052, %v455
      %v1056 = vmul.f32 %v1051, %v454
      %v1057 = vmul.f32 %v1053, %v455
      %1058 = vset.pattern.permute.xlu0 6
      %1059 = vperm.xlu0 %1058, %v854
      %v1060 = vpop.permute.xlu0 %1059
      %1062 = vset.pattern.permute.xlu0 6
      %1063 = vperm.xlu0 %1062, %v855
      %v1064 = vpop.permute.xlu0 %1063
      %v1066 = vmul.f32 %v1054, %v1060
      %v1067 = vmul.f32 %v1055, %v1060
      %v1068 = vmul.f32 %v1056, %v1064
      %v1069 = vmul.f32 %v1057, %v1064
      %v1070 = vadd.f32 %v1038, %v1066
      %v1071 = vadd.f32 %v1039, %v1067
      %v1072 = vadd.f32 %v1040, %v1068
      %v1073 = vadd.f32 %v1041, %v1069
      %1074 = vrot.lane.b32.xlu0 %v850, 112
      %v1075 = vpop.permute.xlu0 %1074
      %1076 = vrot.lane.b32.xlu0 %v852, 112
      %v1077 = vpop.permute.xlu0 %1076
      %1078 = vrot.lane.b32.xlu0 %v851, 112
      %v1079 = vpop.permute.xlu0 %1078
      %1080 = vrot.lane.b32.xlu0 %v853, 112
      %v1081 = vpop.permute.xlu0 %1080
      %v1082 = vsel %vm486, %v1075, %v1079
      %v1083 = vsel %vm486, %v1077, %v1081
      %v1084 = vsel %vm486, %v1079, %v1075
      %v1085 = vsel %vm486, %v1081, %v1077
      %v1086 = vmul.f32 %v1082, %v492
      %v1087 = vmul.f32 %v1084, %v493
      %v1088 = vmul.f32 %v1083, %v492
      %v1089 = vmul.f32 %v1085, %v493
      %1090 = vset.pattern.permute.xlu0 7
      %1091 = vperm.xlu0 %1090, %v854
      %v1092 = vpop.permute.xlu0 %1091
      %1094 = vset.pattern.permute.xlu0 7
      %1095 = vperm.xlu0 %1094, %v855
      %v1096 = vpop.permute.xlu0 %1095
      %v1098 = vmul.f32 %v1086, %v1092
      %v1099 = vmul.f32 %v1087, %v1092
      %v1100 = vmul.f32 %v1088, %v1096
      %v1101 = vmul.f32 %v1089, %v1096
      %v1102 = vadd.f32 %v1070, %v1098
      %v1103 = vadd.f32 %v1071, %v1099
      %v1104 = vadd.f32 %v1072, %v1100
      %v1105 = vadd.f32 %v1073, %v1101
      %1106 = vrot.lane.b32.xlu0 %v850, 111
      %v1107 = vpop.permute.xlu0 %1106
      %1108 = vrot.lane.b32.xlu0 %v852, 111
      %v1109 = vpop.permute.xlu0 %1108
      %1110 = vrot.lane.b32.xlu0 %v851, 111
      %v1111 = vpop.permute.xlu0 %1110
      %1112 = vrot.lane.b32.xlu0 %v853, 111
      %v1113 = vpop.permute.xlu0 %1112
      %v1114 = vsel %vm524, %v1107, %v1111
      %v1115 = vsel %vm524, %v1109, %v1113
      %v1116 = vsel %vm524, %v1111, %v1107
      %v1117 = vsel %vm524, %v1113, %v1109
      %v1118 = vmul.f32 %v1114, %v530
      %v1119 = vmul.f32 %v1116, %v531
      %v1120 = vmul.f32 %v1115, %v530
      %v1121 = vmul.f32 %v1117, %v531
      %1122 = vset.pattern.permute.xlu0 8
      %1123 = vperm.xlu0 %1122, %v854
      %v1124 = vpop.permute.xlu0 %1123
      %1126 = vset.pattern.permute.xlu0 8
      %1127 = vperm.xlu0 %1126, %v855
      %v1128 = vpop.permute.xlu0 %1127
      %v1130 = vmul.f32 %v1118, %v1124
      %v1131 = vmul.f32 %v1119, %v1124
      %v1132 = vmul.f32 %v1120, %v1128
      %v1133 = vmul.f32 %v1121, %v1128
      %v1134 = vadd.f32 %v1102, %v1130
      %v1135 = vadd.f32 %v1103, %v1131
      %v1136 = vadd.f32 %v1104, %v1132
      %v1137 = vadd.f32 %v1105, %v1133
      %1138 = vst [vmem:[%s199 + $0x40] sm:$0xff] %v1134
      %1139 = vst [vmem:[%s199 + $0x48] sm:$0xff] %v1135
      %1140 = vst [vmem:[%s199 + $0x50] sm:$0xff] %v1136
      %1141 = vst [vmem:[%s199 + $0x58] sm:$0xff] %v1137
      %v1142 = vld [vmem:[%s186 + $0x60] sm:$0xff]
      %v1143 = vld [vmem:[%s186 + $0x68] sm:$0xff]
      %v1144 = vld [vmem:[%s186 + $0x70] sm:$0xff]
      %v1145 = vld [vmem:[%s186 + $0x78] sm:$0xff]
      %v1146 = vld [vmem:[%s192 + $0x30] sm:$0xff]
      %v1147 = vld [vmem:[%s192 + $0x38] sm:$0xff]
      %1149 = vset.pattern.permute.xlu0 4
      %1150 = vperm.xlu0 %1149, %v1146
      %v1151 = vpop.permute.xlu0 %1150
      %1154 = vset.pattern.permute.xlu0 4
      %1155 = vperm.xlu0 %1154, %v1147
      %v1156 = vpop.permute.xlu0 %1155
      %v1158 = vmul.f32 %v1142, %v1151
      %v1159 = vmul.f32 %v1143, %v1151
      %v1160 = vmul.f32 %v1144, %v1156
      %v1161 = vmul.f32 %v1145, %v1156
      %1162 = vset.pattern.permute.xlu0 9
      %1163 = vperm.xlu0 %1162, %v1146
      %v1164 = vpop.permute.xlu0 %1163
      %1166 = vset.pattern.permute.xlu0 9
      %1167 = vperm.xlu0 %1166, %v1147
      %v1168 = vpop.permute.xlu0 %1167
      %v1170 = vadd.f32 %v1158, %v1164
      %v1171 = vadd.f32 %v1159, %v1164
      %v1172 = vadd.f32 %v1160, %v1168
      %v1173 = vadd.f32 %v1161, %v1168
      %1174 = vrot.lane.b32.xlu0 %v1142, 17
      %v1175 = vpop.permute.xlu0 %1174
      %1176 = vrot.lane.b32.xlu0 %v1144, 17
      %v1177 = vpop.permute.xlu0 %1176
      %1178 = vrot.lane.b32.xlu0 %v1143, 17
      %v1179 = vpop.permute.xlu0 %1178
      %1180 = vrot.lane.b32.xlu0 %v1145, 17
      %v1181 = vpop.permute.xlu0 %1180
      %v1182 = vsel %vm258, %v1175, %v1179
      %v1183 = vsel %vm258, %v1177, %v1181
      %v1184 = vsel %vm258, %v1179, %v1175
      %v1185 = vsel %vm258, %v1181, %v1177
      %v1186 = vmul.f32 %v1184, %v264
      %v1187 = vmul.f32 %v1182, %v265
      %v1188 = vmul.f32 %v1185, %v264
      %v1189 = vmul.f32 %v1183, %v265
      %1190 = vset.pattern.permute.xlu0 0
      %1191 = vperm.xlu0 %1190, %v1146
      %v1192 = vpop.permute.xlu0 %1191
      %1194 = vset.pattern.permute.xlu0 0
      %1195 = vperm.xlu0 %1194, %v1147
      %v1196 = vpop.permute.xlu0 %1195
      %v1198 = vmul.f32 %v1186, %v1192
      %v1199 = vmul.f32 %v1187, %v1192
      %v1200 = vmul.f32 %v1188, %v1196
      %v1201 = vmul.f32 %v1189, %v1196
      %v1202 = vadd.f32 %v1170, %v1198
      %v1203 = vadd.f32 %v1171, %v1199
      %v1204 = vadd.f32 %v1172, %v1200
      %v1205 = vadd.f32 %v1173, %v1201
      %1206 = vrot.lane.b32.xlu0 %v1142, 16
      %v1207 = vpop.permute.xlu0 %1206
      %1208 = vrot.lane.b32.xlu0 %v1144, 16
      %v1209 = vpop.permute.xlu0 %1208
      %1210 = vrot.lane.b32.xlu0 %v1143, 16
      %v1211 = vpop.permute.xlu0 %1210
      %1212 = vrot.lane.b32.xlu0 %v1145, 16
      %v1213 = vpop.permute.xlu0 %1212
      %v1214 = vsel %vm296, %v1207, %v1211
      %v1215 = vsel %vm296, %v1209, %v1213
      %v1216 = vsel %vm296, %v1211, %v1207
      %v1217 = vsel %vm296, %v1213, %v1209
      %v1218 = vmul.f32 %v1216, %v302
      %v1219 = vmul.f32 %v1214, %v303
      %v1220 = vmul.f32 %v1217, %v302
      %v1221 = vmul.f32 %v1215, %v303
      %1222 = vset.pattern.permute.xlu0 1
      %1223 = vperm.xlu0 %1222, %v1146
      %v1224 = vpop.permute.xlu0 %1223
      %1226 = vset.pattern.permute.xlu0 1
      %1227 = vperm.xlu0 %1226, %v1147
      %v1228 = vpop.permute.xlu0 %1227
      %v1230 = vmul.f32 %v1218, %v1224
      %v1231 = vmul.f32 %v1219, %v1224
      %v1232 = vmul.f32 %v1220, %v1228
      %v1233 = vmul.f32 %v1221, %v1228
      %v1234 = vadd.f32 %v1202, %v1230
      %v1235 = vadd.f32 %v1203, %v1231
      %v1236 = vadd.f32 %v1204, %v1232
      %v1237 = vadd.f32 %v1205, %v1233
      %1238 = vrot.lane.b32.xlu0 %v1142, 15
      %v1239 = vpop.permute.xlu0 %1238
      %1240 = vrot.lane.b32.xlu0 %v1144, 15
      %v1241 = vpop.permute.xlu0 %1240
      %1242 = vrot.lane.b32.xlu0 %v1143, 15
      %v1243 = vpop.permute.xlu0 %1242
      %1244 = vrot.lane.b32.xlu0 %v1145, 15
      %v1245 = vpop.permute.xlu0 %1244
      %v1246 = vsel %vm334, %v1239, %v1243
      %v1247 = vsel %vm334, %v1241, %v1245
      %v1248 = vsel %vm334, %v1243, %v1239
      %v1249 = vsel %vm334, %v1245, %v1241
      %v1250 = vmul.f32 %v1248, %v340
      %v1251 = vmul.f32 %v1246, %v341
      %v1252 = vmul.f32 %v1249, %v340
      %v1253 = vmul.f32 %v1247, %v341
      %1254 = vset.pattern.permute.xlu0 2
      %1255 = vperm.xlu0 %1254, %v1146
      %v1256 = vpop.permute.xlu0 %1255
      %1258 = vset.pattern.permute.xlu0 2
      %1259 = vperm.xlu0 %1258, %v1147
      %v1260 = vpop.permute.xlu0 %1259
      %v1262 = vmul.f32 %v1250, %v1256
      %v1263 = vmul.f32 %v1251, %v1256
      %v1264 = vmul.f32 %v1252, %v1260
      %v1265 = vmul.f32 %v1253, %v1260
      %v1266 = vadd.f32 %v1234, %v1262
      %v1267 = vadd.f32 %v1235, %v1263
      %v1268 = vadd.f32 %v1236, %v1264
      %v1269 = vadd.f32 %v1237, %v1265
      %1270 = vrot.lane.b32.xlu0 %v1142, 1
      %v1271 = vpop.permute.xlu0 %1270
      %1272 = vrot.lane.b32.xlu0 %v1144, 1
      %v1273 = vpop.permute.xlu0 %1272
      %1274 = vrot.lane.b32.xlu0 %v1143, 1
      %v1275 = vpop.permute.xlu0 %1274
      %1276 = vrot.lane.b32.xlu0 %v1145, 1
      %v1277 = vpop.permute.xlu0 %1276
      %v1278 = vsel %vm372, %v1271, %v1275
      %v1279 = vsel %vm372, %v1273, %v1277
      %v1280 = vsel %vm372, %v1275, %v1271
      %v1281 = vsel %vm372, %v1277, %v1273
      %v1282 = vmul.f32 %v1280, %v378
      %v1283 = vmul.f32 %v1278, %v379
      %v1284 = vmul.f32 %v1281, %v378
      %v1285 = vmul.f32 %v1279, %v379
      %1286 = vset.pattern.permute.xlu0 3
      %1287 = vperm.xlu0 %1286, %v1146
      %v1288 = vpop.permute.xlu0 %1287
      %1290 = vset.pattern.permute.xlu0 3
      %1291 = vperm.xlu0 %1290, %v1147
      %v1292 = vpop.permute.xlu0 %1291
      %v1294 = vmul.f32 %v1282, %v1288
      %v1295 = vmul.f32 %v1283, %v1288
      %v1296 = vmul.f32 %v1284, %v1292
      %v1297 = vmul.f32 %v1285, %v1292
      %v1298 = vadd.f32 %v1266, %v1294
      %v1299 = vadd.f32 %v1267, %v1295
      %v1300 = vadd.f32 %v1268, %v1296
      %v1301 = vadd.f32 %v1269, %v1297
      %1302 = vrot.lane.b32.xlu0 %v1142, 127
      %v1303 = vpop.permute.xlu0 %1302
      %1304 = vrot.lane.b32.xlu0 %v1144, 127
      %v1305 = vpop.permute.xlu0 %1304
      %1306 = vrot.lane.b32.xlu0 %v1143, 127
      %v1307 = vpop.permute.xlu0 %1306
      %1308 = vrot.lane.b32.xlu0 %v1145, 127
      %v1309 = vpop.permute.xlu0 %1308
      %v1310 = vsel %vm410, %v1303, %v1307
      %v1311 = vsel %vm410, %v1305, %v1309
      %v1312 = vsel %vm410, %v1307, %v1303
      %v1313 = vsel %vm410, %v1309, %v1305
      %v1314 = vmul.f32 %v1310, %v416
      %v1315 = vmul.f32 %v1312, %v417
      %v1316 = vmul.f32 %v1311, %v416
      %v1317 = vmul.f32 %v1313, %v417
      %1318 = vset.pattern.permute.xlu0 5
      %1319 = vperm.xlu0 %1318, %v1146
      %v1320 = vpop.permute.xlu0 %1319
      %1322 = vset.pattern.permute.xlu0 5
      %1323 = vperm.xlu0 %1322, %v1147
      %v1324 = vpop.permute.xlu0 %1323
      %v1326 = vmul.f32 %v1314, %v1320
      %v1327 = vmul.f32 %v1315, %v1320
      %v1328 = vmul.f32 %v1316, %v1324
      %v1329 = vmul.f32 %v1317, %v1324
      %v1330 = vadd.f32 %v1298, %v1326
      %v1331 = vadd.f32 %v1299, %v1327
      %v1332 = vadd.f32 %v1300, %v1328
      %v1333 = vadd.f32 %v1301, %v1329
      %1334 = vrot.lane.b32.xlu0 %v1142, 113
      %v1335 = vpop.permute.xlu0 %1334
      %1336 = vrot.lane.b32.xlu0 %v1144, 113
      %v1337 = vpop.permute.xlu0 %1336
      %1338 = vrot.lane.b32.xlu0 %v1143, 113
      %v1339 = vpop.permute.xlu0 %1338
      %1340 = vrot.lane.b32.xlu0 %v1145, 113
      %v1341 = vpop.permute.xlu0 %1340
      %v1342 = vsel %vm448, %v1335, %v1339
      %v1343 = vsel %vm448, %v1337, %v1341
      %v1344 = vsel %vm448, %v1339, %v1335
      %v1345 = vsel %vm448, %v1341, %v1337
      %v1346 = vmul.f32 %v1342, %v454
      %v1347 = vmul.f32 %v1344, %v455
      %v1348 = vmul.f32 %v1343, %v454
      %v1349 = vmul.f32 %v1345, %v455
      %1350 = vset.pattern.permute.xlu0 6
      %1351 = vperm.xlu0 %1350, %v1146
      %v1352 = vpop.permute.xlu0 %1351
      %1354 = vset.pattern.permute.xlu0 6
      %1355 = vperm.xlu0 %1354, %v1147
      %v1356 = vpop.permute.xlu0 %1355
      %v1358 = vmul.f32 %v1346, %v1352
      %v1359 = vmul.f32 %v1347, %v1352
      %v1360 = vmul.f32 %v1348, %v1356
      %v1361 = vmul.f32 %v1349, %v1356
      %v1362 = vadd.f32 %v1330, %v1358
      %v1363 = vadd.f32 %v1331, %v1359
      %v1364 = vadd.f32 %v1332, %v1360
      %v1365 = vadd.f32 %v1333, %v1361
      %1366 = vrot.lane.b32.xlu0 %v1142, 112
      %v1367 = vpop.permute.xlu0 %1366
      %1368 = vrot.lane.b32.xlu0 %v1144, 112
      %v1369 = vpop.permute.xlu0 %1368
      %1370 = vrot.lane.b32.xlu0 %v1143, 112
      %v1371 = vpop.permute.xlu0 %1370
      %1372 = vrot.lane.b32.xlu0 %v1145, 112
      %v1373 = vpop.permute.xlu0 %1372
      %v1374 = vsel %vm486, %v1367, %v1371
      %v1375 = vsel %vm486, %v1369, %v1373
      %v1376 = vsel %vm486, %v1371, %v1367
      %v1377 = vsel %vm486, %v1373, %v1369
      %v1378 = vmul.f32 %v1374, %v492
      %v1379 = vmul.f32 %v1376, %v493
      %v1380 = vmul.f32 %v1375, %v492
      %v1381 = vmul.f32 %v1377, %v493
      %1382 = vset.pattern.permute.xlu0 7
      %1383 = vperm.xlu0 %1382, %v1146
      %v1384 = vpop.permute.xlu0 %1383
      %1386 = vset.pattern.permute.xlu0 7
      %1387 = vperm.xlu0 %1386, %v1147
      %v1388 = vpop.permute.xlu0 %1387
      %v1390 = vmul.f32 %v1378, %v1384
      %v1391 = vmul.f32 %v1379, %v1384
      %v1392 = vmul.f32 %v1380, %v1388
      %v1393 = vmul.f32 %v1381, %v1388
      %v1394 = vadd.f32 %v1362, %v1390
      %v1395 = vadd.f32 %v1363, %v1391
      %v1396 = vadd.f32 %v1364, %v1392
      %v1397 = vadd.f32 %v1365, %v1393
      %1398 = vrot.lane.b32.xlu0 %v1142, 111
      %v1399 = vpop.permute.xlu0 %1398
      %1400 = vrot.lane.b32.xlu0 %v1144, 111
      %v1401 = vpop.permute.xlu0 %1400
      %1402 = vrot.lane.b32.xlu0 %v1143, 111
      %v1403 = vpop.permute.xlu0 %1402
      %1404 = vrot.lane.b32.xlu0 %v1145, 111
      %v1405 = vpop.permute.xlu0 %1404
      %v1406 = vsel %vm524, %v1399, %v1403
      %v1407 = vsel %vm524, %v1401, %v1405
      %v1408 = vsel %vm524, %v1403, %v1399
      %v1409 = vsel %vm524, %v1405, %v1401
      %v1410 = vmul.f32 %v1406, %v530
      %v1411 = vmul.f32 %v1408, %v531
      %v1412 = vmul.f32 %v1407, %v530
      %v1413 = vmul.f32 %v1409, %v531
      %1414 = vset.pattern.permute.xlu0 8
      %1415 = vperm.xlu0 %1414, %v1146
      %v1416 = vpop.permute.xlu0 %1415
      %1418 = vset.pattern.permute.xlu0 8
      %1419 = vperm.xlu0 %1418, %v1147
      %v1420 = vpop.permute.xlu0 %1419
      %v1422 = vmul.f32 %v1410, %v1416
      %v1423 = vmul.f32 %v1411, %v1416
      %v1424 = vmul.f32 %v1412, %v1420
      %v1425 = vmul.f32 %v1413, %v1420
      %v1426 = vadd.f32 %v1394, %v1422
      %v1427 = vadd.f32 %v1395, %v1423
      %v1428 = vadd.f32 %v1396, %v1424
      %v1429 = vadd.f32 %v1397, %v1425
      %1430 = vst [vmem:[%s199 + $0x60] sm:$0xff] %v1426
      %1431 = vst [vmem:[%s199 + $0x68] sm:$0xff] %v1427
      %1432 = vst [vmem:[%s199 + $0x70] sm:$0xff] %v1428
      %1433 = vst [vmem:[%s199 + $0x78] sm:$0xff] %v1429
      %s1434 = smul.u32 8, %s14
      %p1435 = scmp.lt.s32.totalorder %s1434, 31
      %s1436 = scalar_select %p1435, %s1434, 31
      %s1437 = smul.addr %s1436, 2
      %s1438 = smul.addr %s1437, 8
      %s1439 = scalar_lea.vmem %s3, %s1438
      // Predicated region
      $region33: #{_lambda_.1} parent=31 // pred_check
        %p1440 = pneg %p105
      $region34: #{_lambda_.1} parent=31 // pred_check_branch
        %1442 = sbr.rel (%p1440) target = $region36
      $region35: #{_lambda_.1} parent=31 // pred_region
        %s1443 = smul.u32 8, %s14
      $region36: #{_lambda_.1} parent=31 // pred_fallthru
        _
    $region32: #{_lambda_.1} parent=5 // pred_fallthru
      _
    %p1444 = scmp.le.s32.totalorder 2, %s9
    // Predicated region
    $region37: #{_lambda_.1} parent=5 // pred_check
      %p1445 = pneg %p1444
    $region38: #{_lambda_.1} parent=5 // pred_check_branch
      %1447 = sbr.rel (%p1445) target = $region40
    $region39: #{_lambda_.1} parent=5 // pred_region
      %s1448 = ssub.s32 %s9, 2
      // Predicated region
      $region41: #{_lambda_.1} parent=39 // pred_check
        %p1449 = pneg %p111
      $region42: #{_lambda_.1} parent=39 // pred_check_branch
        %1451 = sbr.rel (%p1449) target = $region44
      $region43: #{_lambda_.1} parent=39 // pred_region
        %s1452 = smul.u32 8, %s15
        %p1453 = scmp.lt.s32.totalorder %s1452, 31
        %s1454 = scalar_select %p1453, %s1452, 31
        %s1455 = smul.addr %s1454, 2
        %s1456 = smul.addr %s1455, 8
        %s1457 = scalar_lea.vmem %s3, %s1456
      $region44: #{_lambda_.1} parent=39 // pred_fallthru
        _
    $region40: #{_lambda_.1} parent=5 // pred_fallthru
      _
  $region6: #{_lambda_.1} parent=0 // loop_footer
    %s13 = sadd.s32 1, %s9
  $region7: #{_lambda_.1} parent=0 // loop_footer_branch
    %8 = sbr.rel target = $region3
  $region8: #{_lambda_.1} parent=0 // loop_exit
    _

</llo_original>
